<compile_context>
chip_gen: v5e
topology: v5e:2x2
jax: 0.10.0
libtpu: 0.0.40
codegen_flags: <defaults>
</compile_context>

<pallas_src>
import functools
import math

import jax
import jax.numpy as jnp
from jax import lax
from jax.experimental import pallas as pl
from jax.experimental.pallas import tpu as pltpu

_MIB = 1024 * 1024


def _sdpa_kernel(q_ref, k_ref, v_ref, mask_ref, ctx_ref, attn_ref, *, scale):
    # Tiles: q (g, tq, Dk), k (g, Lk, Dk), v (g, Lk, Dv), mask (g, tq, Lk) bool.
    # scores = Q @ K^T  — contracts the last dims directly (no K transpose
    # through the XLU), batched over the head-group dim, fp32 MXU accumulate.
    scores = lax.dot_general(
        q_ref[...], k_ref[...],
        dimension_numbers=(((2,), (2,)), ((0,), (0,))),
        preferred_element_type=jnp.float32,
    )
    # Divide-after-matmul in fp32 (same ordering as torch); VPU mults are free
    # here since the kernel is HBM-writeback bound.
    scores = scores * jnp.float32(scale)

    # masked_fill_(attn_mask, -1e9) — boolean mask used directly.
    scores = jnp.where(mask_ref[...], jnp.float32(-1e9), scores)

    # Numerically stable softmax over the key dim, fp32 math, exact divide.
    m = jnp.max(scores, axis=-1, keepdims=True)
    e = jnp.exp(scores - m)
    attn = e / jnp.sum(e, axis=-1, keepdims=True)

    # context = attn @ V — probabilities in V's dtype (keeps bf16 inputs on the
    # fast MXU path), fp32 accumulation.
    ctx = lax.dot_general(
        attn.astype(v_ref.dtype), v_ref[...],
        dimension_numbers=(((2,), (1,)), ((0,), (0,))),
        preferred_element_type=jnp.float32,
    )

    ctx_ref[...] = ctx.astype(ctx_ref.dtype)
    attn_ref[...] = attn.astype(attn_ref.dtype)


def _round_up(x, m):
    return ((x + m - 1) // m) * m


def _divisors_desc(n, cap):
    return [d for d in range(min(cap, n), 0, -1) if n % d == 0]


def _vmem_capacity_bytes():
    """Per-core VMEM capacity (128 MiB v5e/v6e, 64 MiB v7x); conservative fallback."""
    try:
        cap = getattr(pltpu.get_tpu_info(), "vmem_capacity_bytes", None)
        if cap:
            return int(cap)
    except Exception:
        pass
    return 64 * _MIB  # conservative (v7x per-TensorCore VMEM)


def _step_vmem_bytes(g, tq, Lk, Dk, Dv, in_bytes, attn_bytes):
    """Conservative per-grid-step VMEM estimate (assumes double-buffered K/V)."""
    q_in = 2 * g * tq * Dk * in_bytes              # Q tile, double-buffered
    kv_in = 2 * g * Lk * (Dk + Dv) * in_bytes      # K+V (budgeted at 2x; 1x at runtime)
    m_in = 2 * g * tq * Lk * 1                     # bool mask tile, double-buffered
    ctx_o = 2 * g * tq * Dv * in_bytes             # context out, double-buffered
    attn_o = 2 * g * tq * Lk * attn_bytes          # attn out, double-buffered
    interm = 2 * g * tq * Lk * 4                   # live fp32 scores/exp inside the body
    return q_in + kv_in + m_in + ctx_o + attn_o + interm


def _select_tiling(BH, Lq, Lk, Dk, Dv, in_bytes, attn_bytes, budget,
                   max_group, max_tq):
    """Pick (g, tq) maximizing tile size subject to the per-step VMEM budget."""
    g_cands = _divisors_desc(BH, max_group)

    tq_cands = []
    if Lq <= max_tq:
        tq_cands.append(Lq)                        # full query dim: always layout-legal
    t = min(max_tq, _round_up(Lq, 32))
    t -= t % 32
    while t >= 32:
        if t < Lq and t not in tq_cands:
            tq_cands.append(t)                     # 32-aligned query tiles
        t -= 32

    best, best_score = None, None
    for g in g_cands:
        for tq in tq_cands:
            if _step_vmem_bytes(g, tq, Lk, Dk, Dv, in_bytes, attn_bytes) <= budget:
                score = (g * tq, tq)               # biggest tile, prefer bigger tq
                if best_score is None or score > best_score:
                    best, best_score = (g, tq), score
    if best is None:
        # Nothing fits (very long Lk): take the smallest step and let
        # vmem_limit_bytes stretch.  See TODO(synk) at the top for the
        # Lk-chunked two-pass softmax that would bound this properly.
        best = (1, min(tq_cands))
    return best


def scaled_dot_product_attention(Q, K, V, attn_mask, *, max_group=8, max_tq=256):
    """Q: [B,H,Lq,Dk], K: [B,H,Lk,Dk], V: [B,H,Lk,Dv], attn_mask: [B,H,Lq,Lk] bool.

    Returns (context [B,H,Lq,Dv], attn [B,H,Lq,Lk]) like the PyTorch module.
    """
    B, H, Lq, Dk = Q.shape
    Lk = K.shape[2]
    Dv = V.shape[3]
    scale = 1.0 / math.sqrt(float(Dk))

    BH = B * H
    q = Q.reshape(BH, Lq, Dk)
    k = K.reshape(BH, Lk, Dk)
    v = V.reshape(BH, Lk, Dv)
    # Boolean mask passes straight through (1 byte/elem already; no astype copy).
    mask = attn_mask.reshape(BH, Lq, Lk)

    in_bytes = Q.dtype.itemsize
    attn_dtype = Q.dtype                 # match torch: attn in the scores/input dtype
    attn_bytes = attn_dtype.itemsize

    # Generation-aware VMEM budgeting.
    vmem_cap = _vmem_capacity_bytes()
    budget = int(0.70 * vmem_cap)        # headroom for compiler-internal scratch
    g, tq = _select_tiling(BH, Lq, Lk, Dk, Dv, in_bytes, attn_bytes, budget,
                           max_group, max_tq)

    # Pad the query dim so tq divides it; padded rows are sliced off below
    # (padded mask rows are False, so the softmax there is well defined).
    Lqp = _round_up(Lq, tq)
    if Lqp != Lq:
        pad = Lqp - Lq
        q = jnp.pad(q, ((0, 0), (0, pad), (0, 0)))
        mask = jnp.pad(mask, ((0, 0), (0, pad), (0, 0)))

    step_bytes = _step_vmem_bytes(g, tq, Lk, Dk, Dv, in_bytes, attn_bytes)
    vmem_limit = int(min(0.85 * vmem_cap, max(2 * step_bytes, 32 * _MIB)))

    kernel = functools.partial(_sdpa_kernel, scale=scale)
    out_shape = (
        jax.ShapeDtypeStruct((BH, Lqp, Dv), Q.dtype),
        jax.ShapeDtypeStruct((BH, Lqp, Lk), attn_dtype),
    )

    def build(kv_single_buffered):
        kv_kwargs = {}
        if kv_single_buffered:
            # K/V block indices only change on the outer (b) grid axis; one
            # buffer frees g*Lk*(Dk+Dv) bytes of otherwise idle double-buffer
            # at the cost of one exposed DMA per b-transition.
            kv_kwargs = dict(pipeline_mode=pl.Buffered(1))
        return pl.pallas_call(
            kernel,
            out_shape=out_shape,
            grid_spec=pltpu.PrefetchScalarGridSpec(
                num_scalar_prefetch=0,
                grid=(BH // g, Lqp // tq),
                in_specs=[
                    pl.BlockSpec((g, tq, Dk), lambda b, qi: (b, qi, 0)),             # Q tile
                    pl.BlockSpec((g, Lk, Dk), lambda b, qi: (b, 0, 0), **kv_kwargs),  # K (full keys)
                    pl.BlockSpec((g, Lk, Dv), lambda b, qi: (b, 0, 0), **kv_kwargs),  # V (full keys)
                    pl.BlockSpec((g, tq, Lk), lambda b, qi: (b, qi, 0)),             # mask tile
                ],
                out_specs=[
                    pl.BlockSpec((g, tq, Dv), lambda b, qi: (b, qi, 0)),   # context
                    pl.BlockSpec((g, tq, Lk), lambda b, qi: (b, qi, 0)),   # attn
                ],
            ),
            # No reduction axis: both grid axes are independent (megacore-friendly).
            compiler_params=pltpu.CompilerParams(
                dimension_semantics=("parallel", "parallel"),
                vmem_limit_bytes=vmem_limit,
            ),
        )

    try:
        ctx, attn = build(kv_single_buffered=True)(q, k, v, mask)
    except Exception:
        # Installed JAX without BlockSpec pipeline_mode / Buffered(1):
        # fall back to default (double) buffering — correctness identical.
        ctx, attn = build(kv_single_buffered=False)(q, k, v, mask)

    ctx = ctx[:, :Lq].reshape(B, H, Lq, Dv)
    attn = attn[:, :Lq].reshape(B, H, Lq, Lk)
    return ctx, attn


def _reference(Q, K, V, attn_mask):
    Dk = Q.shape[-1]
    scores = jnp.einsum("bhqd,bhkd->bhqk", Q, K) / jnp.sqrt(jnp.float32(Dk))
    scores = jnp.where(attn_mask, -1e9, scores)
    attn = jax.nn.softmax(scores, axis=-1)
    ctx = jnp.einsum("bhqk,bhkd->bhqd", attn, V)
    return ctx, attn


if __name__ == "__main__":
    B, H, Lq, Lk, Dk, Dv = 2, 4, 8, 8, 32, 32
    key = jax.random.PRNGKey(0)
    kq, kk, kv, km = jax.random.split(key, 4)

    Q = jax.random.normal(kq, (B, H, Lq, Dk), dtype=jnp.float32)
    K = jax.random.normal(kk, (B, H, Lk, Dk), dtype=jnp.float32)
    V = jax.random.normal(kv, (B, H, Lk, Dv), dtype=jnp.float32)
    # Random boolean mask (True = masked position), like a padding mask.
    attn_mask = jax.random.bernoulli(km, p=0.2, shape=(B, H, Lq, Lk))

    ctx, attn = scaled_dot_product_attention(Q, K, V, attn_mask)
    jax.block_until_ready((ctx, attn))

    ctx_ref, attn_ref = _reference(Q, K, V, attn_mask)
    assert ctx.shape == (B, H, Lq, Dv) and attn.shape == (B, H, Lq, Lk)
    # Softmax now uses an exact divide; the remaining tolerance only covers the
    # difference between the in-kernel MXU default-precision f32 matmuls and
    # the XLA reference einsums.
    assert jnp.allclose(ctx, ctx_ref, atol=2e-3, rtol=2e-3)
    assert jnp.allclose(attn, attn_ref, atol=2e-3, rtol=2e-3)

    print("KERNEL_OK")
</pallas_src>

<mosaic_0001>
module attributes {stable_mosaic.version = 11 : i64} {
  func.func @_sdpa_kernel(%arg0: i32, %arg1: i32, %arg2: memref<8x8x32xf32, #tpu.memory_space<vmem>>, %arg3: memref<8x8x32xf32, #tpu.memory_space<vmem>>, %arg4: memref<8x8x32xf32, #tpu.memory_space<vmem>>, %arg5: memref<8x8x8xi32, #tpu.memory_space<vmem>>, %arg6: memref<8x8x32xf32, #tpu.memory_space<vmem>>, %arg7: memref<8x8x8xf32, #tpu.memory_space<vmem>>) attributes {dimension_semantics = [#tpu.dimension_semantics<parallel>, #tpu.dimension_semantics<parallel>], iteration_bounds = array<i64: 1, 1>, scalar_prefetch = 0 : i64, scratch_operands = 0 : i64, tpu.core_type = #tpu.core_type<tc>, window_params = [{transform_indices = @transform_0, window_bounds = array<i64: 8, 8, 32>}, {pipeline_mode = #tpu.pipeline_mode<synchronous>, transform_indices = @transform_1, window_bounds = array<i64: 8, 8, 32>}, {pipeline_mode = #tpu.pipeline_mode<synchronous>, transform_indices = @transform_2, window_bounds = array<i64: 8, 8, 32>}, {transform_indices = @transform_3, window_bounds = array<i64: 8, 8, 8>}, {transform_indices = @transform_4, window_bounds = array<i64: 8, 8, 32>}, {transform_indices = @transform_5, window_bounds = array<i64: 8, 8, 8>}]} {
    %c0 = arith.constant 0 : index
    %c0_0 = arith.constant 0 : index
    %c0_1 = arith.constant 0 : index
    %0 = vector.load %arg2[%c0, %c0_0, %c0_1] : memref<8x8x32xf32, #tpu.memory_space<vmem>>, vector<8x8x32xf32>
    %c0_2 = arith.constant 0 : index
    %c0_3 = arith.constant 0 : index
    %c0_4 = arith.constant 0 : index
    %1 = vector.load %arg3[%c0_2, %c0_3, %c0_4] : memref<8x8x32xf32, #tpu.memory_space<vmem>>, vector<8x8x32xf32>
    %cst = arith.constant dense<0.000000e+00> : vector<8x8x8xf32>
    %2 = tpu.matmul %0, %1, %cst {dimension_numbers = #tpu.dot_dimension_numbers<[2], [2], [1], [1], [0, 0, 0, 1, 1, 1], [0], [0]>} : vector<8x8x32xf32>, vector<8x8x32xf32>, vector<8x8x8xf32> -> vector<8x8x8xf32>
    %cst_5 = arith.constant 0.176776692 : f32
    %3 = vector.broadcast %cst_5 : f32 to vector<8x8x8xf32>
    %4 = arith.mulf %2, %3 : vector<8x8x8xf32>
    %c0_6 = arith.constant 0 : index
    %c0_7 = arith.constant 0 : index
    %c0_8 = arith.constant 0 : index
    %5 = vector.load %arg5[%c0_6, %c0_7, %c0_8] : memref<8x8x8xi32, #tpu.memory_space<vmem>>, vector<8x8x8xi32>
    %cst_9 = arith.constant dense<0> : vector<8x8x8xi32>
    %6 = arith.cmpi ne, %5, %cst_9 : vector<8x8x8xi32>
    %cst_10 = arith.constant -1.000000e+09 : f32
    %7 = vector.broadcast %cst_10 : f32 to vector<8x8x8xf32>
    %8 = arith.select %6, %7, %4 : vector<8x8x8xi1>, vector<8x8x8xf32>
    %cst_11 = arith.constant dense<0xFF800000> : vector<8x8xf32>
    %9 = vector.multi_reduction <maximumf>, %8, %cst_11 [2] : vector<8x8x8xf32> to vector<8x8xf32>
    %10 = vector.shape_cast %9 : vector<8x8xf32> to vector<8x8x1xf32>
    %11 = vector.broadcast %10 : vector<8x8x1xf32> to vector<8x8x8xf32>
    %12 = arith.subf %8, %11 : vector<8x8x8xf32>
    %13 = math.exp %12 : vector<8x8x8xf32>
    %cst_12 = arith.constant dense<0.000000e+00> : vector<8x8xf32>
    %14 = vector.multi_reduction <add>, %13, %cst_12 [2] : vector<8x8x8xf32> to vector<8x8xf32>
    %15 = vector.shape_cast %14 : vector<8x8xf32> to vector<8x8x1xf32>
    %16 = vector.broadcast %15 : vector<8x8x1xf32> to vector<8x8x8xf32>
    %17 = arith.divf %13, %16 : vector<8x8x8xf32>
    %c0_13 = arith.constant 0 : index
    %c0_14 = arith.constant 0 : index
    %c0_15 = arith.constant 0 : index
    %18 = vector.load %arg4[%c0_13, %c0_14, %c0_15] : memref<8x8x32xf32, #tpu.memory_space<vmem>>, vector<8x8x32xf32>
    %cst_16 = arith.constant dense<0.000000e+00> : vector<8x8x32xf32>
    %19 = tpu.matmul %17, %18, %cst_16 {dimension_numbers = #tpu.dot_dimension_numbers<[2], [1], [1], [2], [0, 0, 0, 1, 1, 2], [0], [0]>} : vector<8x8x8xf32>, vector<8x8x32xf32>, vector<8x8x32xf32> -> vector<8x8x32xf32>
    %c0_17 = arith.constant 0 : index
    %c0_18 = arith.constant 0 : index
    %c0_19 = arith.constant 0 : index
    %20 = vector.load %arg6[%c0_17, %c0_18, %c0_19] : memref<8x8x32xf32, #tpu.memory_space<vmem>>, vector<8x8x32xf32>
    tpu.vector_store %arg6[%c0_17, %c0_18, %c0_19], %19 {strides = array<i32>} : memref<8x8x32xf32, #tpu.memory_space<vmem>>, vector<8x8x32xf32>,
    %c0_20 = arith.constant 0 : index
    %c0_21 = arith.constant 0 : index
    %c0_22 = arith.constant 0 : index
    %21 = vector.load %arg7[%c0_20, %c0_21, %c0_22] : memref<8x8x8xf32, #tpu.memory_space<vmem>>, vector<8x8x8xf32>
    tpu.vector_store %arg7[%c0_20, %c0_21, %c0_22], %17 {strides = array<i32>} : memref<8x8x8xf32, #tpu.memory_space<vmem>>, vector<8x8x8xf32>,
    return
  }
  func.func @transform_0(%arg0: i32, %arg1: i32) -> (i32, i32, i32) {
    %c0_i32 = arith.constant 0 : i32
    %c0_i32_0 = arith.constant 0 : i32
    return %arg0, %arg1, %c0_i32 : i32, i32, i32
  }
  func.func @transform_1(%arg0: i32, %arg1: i32) -> (i32, i32, i32) {
    %c0_i32 = arith.constant 0 : i32
    %c0_i32_0 = arith.constant 0 : i32
    %c0_i32_1 = arith.constant 0 : i32
    return %arg0, %c0_i32, %c0_i32_0 : i32, i32, i32
  }
  func.func @transform_2(%arg0: i32, %arg1: i32) -> (i32, i32, i32) {
    %c0_i32 = arith.constant 0 : i32
    %c0_i32_0 = arith.constant 0 : i32
    %c0_i32_1 = arith.constant 0 : i32
    return %arg0, %c0_i32, %c0_i32_0 : i32, i32, i32
  }
  func.func @transform_3(%arg0: i32, %arg1: i32) -> (i32, i32, i32) {
    %c0_i32 = arith.constant 0 : i32
    %c0_i32_0 = arith.constant 0 : i32
    return %arg0, %arg1, %c0_i32 : i32, i32, i32
  }
  func.func @transform_4(%arg0: i32, %arg1: i32) -> (i32, i32, i32) {
    %c0_i32 = arith.constant 0 : i32
    %c0_i32_0 = arith.constant 0 : i32
    return %arg0, %arg1, %c0_i32 : i32, i32, i32
  }
  func.func @transform_5(%arg0: i32, %arg1: i32) -> (i32, i32, i32) {
    %c0_i32 = arith.constant 0 : i32
    %c0_i32_0 = arith.constant 0 : i32
    return %arg0, %arg1, %c0_i32 : i32, i32, i32
  }
}

module attributes {stable_mosaic.version = 11 : i64} {
  func.func @_sdpa_kernel(%arg0: i32, %arg1: i32, %arg2: memref<8x8x32xf32, #tpu.memory_space<vmem>>, %arg3: memref<8x8x32xf32, #tpu.memory_space<vmem>>, %arg4: memref<8x8x32xf32, #tpu.memory_space<vmem>>, %arg5: memref<8x8x8xi32, #tpu.memory_space<vmem>>, %arg6: memref<8x8x32xf32, #tpu.memory_space<vmem>>, %arg7: memref<8x8x8xf32, #tpu.memory_space<vmem>>) attributes {dimension_semantics = [#tpu.dimension_semantics<parallel>, #tpu.dimension_semantics<parallel>], iteration_bounds = array<i64: 1, 1>, scalar_prefetch = 0 : i64, scratch_operands = 0 : i64, tpu.core_type = #tpu.core_type<tc>, window_params = [{transform_indices = @transform_0, window_bounds = array<i64: 8, 8, 32>}, {transform_indices = @transform_1, window_bounds = array<i64: 8, 8, 32>}, {transform_indices = @transform_2, window_bounds = array<i64: 8, 8, 32>}, {transform_indices = @transform_3, window_bounds = array<i64: 8, 8, 8>}, {transform_indices = @transform_4, window_bounds = array<i64: 8, 8, 32>}, {transform_indices = @transform_5, window_bounds = array<i64: 8, 8, 8>}]} {
    %c0 = arith.constant 0 : index
    %c0_0 = arith.constant 0 : index
    %c0_1 = arith.constant 0 : index
    %0 = vector.load %arg2[%c0, %c0_0, %c0_1] : memref<8x8x32xf32, #tpu.memory_space<vmem>>, vector<8x8x32xf32>
    %c0_2 = arith.constant 0 : index
    %c0_3 = arith.constant 0 : index
    %c0_4 = arith.constant 0 : index
    %1 = vector.load %arg3[%c0_2, %c0_3, %c0_4] : memref<8x8x32xf32, #tpu.memory_space<vmem>>, vector<8x8x32xf32>
    %cst = arith.constant dense<0.000000e+00> : vector<8x8x8xf32>
    %2 = tpu.matmul %0, %1, %cst {dimension_numbers = #tpu.dot_dimension_numbers<[2], [2], [1], [1], [0, 0, 0, 1, 1, 1], [0], [0]>} : vector<8x8x32xf32>, vector<8x8x32xf32>, vector<8x8x8xf32> -> vector<8x8x8xf32>
    %cst_5 = arith.constant 0.176776692 : f32
    %3 = vector.broadcast %cst_5 : f32 to vector<8x8x8xf32>
    %4 = arith.mulf %2, %3 : vector<8x8x8xf32>
    %c0_6 = arith.constant 0 : index
    %c0_7 = arith.constant 0 : index
    %c0_8 = arith.constant 0 : index
    %5 = vector.load %arg5[%c0_6, %c0_7, %c0_8] : memref<8x8x8xi32, #tpu.memory_space<vmem>>, vector<8x8x8xi32>
    %cst_9 = arith.constant dense<0> : vector<8x8x8xi32>
    %6 = arith.cmpi ne, %5, %cst_9 : vector<8x8x8xi32>
    %cst_10 = arith.constant -1.000000e+09 : f32
    %7 = vector.broadcast %cst_10 : f32 to vector<8x8x8xf32>
    %8 = arith.select %6, %7, %4 : vector<8x8x8xi1>, vector<8x8x8xf32>
    %cst_11 = arith.constant dense<0xFF800000> : vector<8x8xf32>
    %9 = vector.multi_reduction <maximumf>, %8, %cst_11 [2] : vector<8x8x8xf32> to vector<8x8xf32>
    %10 = vector.shape_cast %9 : vector<8x8xf32> to vector<8x8x1xf32>
    %11 = vector.broadcast %10 : vector<8x8x1xf32> to vector<8x8x8xf32>
    %12 = arith.subf %8, %11 : vector<8x8x8xf32>
    %13 = math.exp %12 : vector<8x8x8xf32>
    %cst_12 = arith.constant dense<0.000000e+00> : vector<8x8xf32>
    %14 = vector.multi_reduction <add>, %13, %cst_12 [2] : vector<8x8x8xf32> to vector<8x8xf32>
    %15 = vector.shape_cast %14 : vector<8x8xf32> to vector<8x8x1xf32>
    %16 = vector.broadcast %15 : vector<8x8x1xf32> to vector<8x8x8xf32>
    %17 = arith.divf %13, %16 : vector<8x8x8xf32>
    %c0_13 = arith.constant 0 : index
    %c0_14 = arith.constant 0 : index
    %c0_15 = arith.constant 0 : index
    %18 = vector.load %arg4[%c0_13, %c0_14, %c0_15] : memref<8x8x32xf32, #tpu.memory_space<vmem>>, vector<8x8x32xf32>
    %cst_16 = arith.constant dense<0.000000e+00> : vector<8x8x32xf32>
    %19 = tpu.matmul %17, %18, %cst_16 {dimension_numbers = #tpu.dot_dimension_numbers<[2], [1], [1], [2], [0, 0, 0, 1, 1, 2], [0], [0]>} : vector<8x8x8xf32>, vector<8x8x32xf32>, vector<8x8x32xf32> -> vector<8x8x32xf32>
    %c0_17 = arith.constant 0 : index
    %c0_18 = arith.constant 0 : index
    %c0_19 = arith.constant 0 : index
    %20 = vector.load %arg6[%c0_17, %c0_18, %c0_19] : memref<8x8x32xf32, #tpu.memory_space<vmem>>, vector<8x8x32xf32>
    tpu.vector_store %arg6[%c0_17, %c0_18, %c0_19], %19 {strides = array<i32>} : memref<8x8x32xf32, #tpu.memory_space<vmem>>, vector<8x8x32xf32>,
    %c0_20 = arith.constant 0 : index
    %c0_21 = arith.constant 0 : index
    %c0_22 = arith.constant 0 : index
    %21 = vector.load %arg7[%c0_20, %c0_21, %c0_22] : memref<8x8x8xf32, #tpu.memory_space<vmem>>, vector<8x8x8xf32>
    tpu.vector_store %arg7[%c0_20, %c0_21, %c0_22], %17 {strides = array<i32>} : memref<8x8x8xf32, #tpu.memory_space<vmem>>, vector<8x8x8xf32>,
    return
  }
  func.func @transform_0(%arg0: i32, %arg1: i32) -> (i32, i32, i32) {
    %c0_i32 = arith.constant 0 : i32
    %c0_i32_0 = arith.constant 0 : i32
    return %arg0, %arg1, %c0_i32 : i32, i32, i32
  }
  func.func @transform_1(%arg0: i32, %arg1: i32) -> (i32, i32, i32) {
    %c0_i32 = arith.constant 0 : i32
    %c0_i32_0 = arith.constant 0 : i32
    %c0_i32_1 = arith.constant 0 : i32
    return %arg0, %c0_i32, %c0_i32_0 : i32, i32, i32
  }
  func.func @transform_2(%arg0: i32, %arg1: i32) -> (i32, i32, i32) {
    %c0_i32 = arith.constant 0 : i32
    %c0_i32_0 = arith.constant 0 : i32
    %c0_i32_1 = arith.constant 0 : i32
    return %arg0, %c0_i32, %c0_i32_0 : i32, i32, i32
  }
  func.func @transform_3(%arg0: i32, %arg1: i32) -> (i32, i32, i32) {
    %c0_i32 = arith.constant 0 : i32
    %c0_i32_0 = arith.constant 0 : i32
    return %arg0, %arg1, %c0_i32 : i32, i32, i32
  }
  func.func @transform_4(%arg0: i32, %arg1: i32) -> (i32, i32, i32) {
    %c0_i32 = arith.constant 0 : i32
    %c0_i32_0 = arith.constant 0 : i32
    return %arg0, %arg1, %c0_i32 : i32, i32, i32
  }
  func.func @transform_5(%arg0: i32, %arg1: i32) -> (i32, i32, i32) {
    %c0_i32 = arith.constant 0 : i32
    %c0_i32_0 = arith.constant 0 : i32
    return %arg0, %arg1, %c0_i32 : i32, i32, i32
  }
}

</mosaic_0001>

<llo_original>
// kernel: tpu_custom_call.1
$region0: #{tpu_custom_call.1}
  #allocation0 [shape = 'u32[]', space=smem, size = 0x4, offset = 0x4, fixed_abs, tag = 'smem constant byte address 0x4 - core index']
  #allocation1 [shape = 'u32[72,128]{1,0:T(1,128)}', space=vmem, size = 0x9000, scoped, tag = 'internal scratch']
  %s0 = inlined_call_operand.vmem [shape: f32[8,8,32], index: 0, kind: input, shape index: {}]
  %s1 = inlined_call_operand.hbm [shape: f32[8,8,32], index: 1, kind: input, shape index: {}]
  %s2 = inlined_call_operand.hbm [shape: f32[8,8,32], index: 2, kind: input, shape index: {}]
  %s3 = inlined_call_operand.vmem [shape: s32[8,8,8], index: 3, kind: input, shape index: {}]
  %s4 = inlined_call_operand.hbm [shape: f32[8,8,32], index: 4, kind: output, shape index: {0}]
  %s5 = inlined_call_operand.hbm [shape: f32[8,8,8], index: 5, kind: output, shape index: {1}]
  %6 = xla_tuple %s4, %s5
  %s7 = sld [smem:[#allocation0]]
  $region42: #{tpu_custom_call.1} parent=0
    _
  %s9 = ssub.s32 1, %s7
  %s10 = scalar_select 0, %s9, %s7
  $region1: #{tpu_custom_call.1} parent=0
    #allocation2 [shape = 'u8[32768]{0}', space=vmem, size = 0x8000, scoped, tag = 'input window, operand 1, single buffered']
    #allocation3 [shape = 's32[1]{0}', space=sflag, size = 0x4, scoped, tag = 'scoped memory for tpu_custom_call.1']
    #allocation4 [shape = 's32[1]{0}', space=sflag, size = 0x4, scoped, tag = 'scoped memory for tpu_custom_call.1']
    #allocation5 [shape = 'u8[32768]{0}', space=vmem, size = 0x8000, scoped, tag = 'input window, operand 2, single buffered']
    #allocation6 [shape = 's32[1]{0}', space=sflag, size = 0x4, scoped, tag = 'scoped memory for tpu_custom_call.1']
    #allocation7 [shape = 'u8[32768]{0}', space=vmem, size = 0x8000, scoped, tag = 'output window, operand 0, single buffered']
    #allocation8 [shape = 'u8[32768]{0}', space=vmem, size = 0x8000, scoped, tag = 'output window, operand 1, single buffered']
    #allocation9 [shape = 's32[1]{0}', space=sflag, size = 0x4, scoped, tag = 'scoped memory for tpu_custom_call.1']
    %11 = vsyncpa [#allocation3], 0
    %12 = vsyncpa [#allocation6], 0
    %13 = vsyncpa [#allocation4], 0
    %14 = vsyncpa [#allocation9], 0
    // Predicated region
    $region2: #{tpu_custom_call.1} parent=1 // pred_check
      _
    $region3: #{tpu_custom_call.1} parent=1 // pred_check_branch
      %16 = sbr.rel (0) target = $region5
    $region4: #{tpu_custom_call.1} parent=1 // pred_region
      _
    $region5: #{tpu_custom_call.1} parent=1 // pred_fallthru
      _
    // Predicated region
    $region6: #{tpu_custom_call.1} parent=1 // pred_check
      _
    $region7: #{tpu_custom_call.1} parent=1 // pred_check_branch
      %18 = sbr.rel (0) target = $region9
    $region8: #{tpu_custom_call.1} parent=1 // pred_region
      %20 = vsyncadd [#allocation3], 0
      %s21 = sshll.u32 %s1, 4
      %s22 = int_to_ptr.hbm [resolvable:$true] %s21
      %s23 = sshll.u32 [#allocation2], 4
      %s24 = int_to_ptr.vmem [resolvable:$true] %s23
      %29 = dma.hbm_to_vmem [thread:$0]  %s22, 1024, %s24, [#allocation3], 128, 128, 8
    $region9: #{tpu_custom_call.1} parent=1 // pred_fallthru
      _
    // Predicated region
    $region10: #{tpu_custom_call.1} parent=1 // pred_check
      _
    $region11: #{tpu_custom_call.1} parent=1 // pred_check_branch
      %31 = sbr.rel (0) target = $region13
    $region12: #{tpu_custom_call.1} parent=1 // pred_region
      %33 = vsyncadd [#allocation6], 0
      %s34 = sshll.u32 %s2, 4
      %s35 = int_to_ptr.hbm [resolvable:$true] %s34
      %s36 = sshll.u32 [#allocation5], 4
      %s37 = int_to_ptr.vmem [resolvable:$true] %s36
      %42 = dma.hbm_to_vmem [thread:$0]  %s35, 1024, %s37, [#allocation6], 128, 128, 8
    $region13: #{tpu_custom_call.1} parent=1 // pred_fallthru
      _
    // Predicated region
    $region14: #{tpu_custom_call.1} parent=1 // pred_check
      _
    $region15: #{tpu_custom_call.1} parent=1 // pred_check_branch
      %44 = sbr.rel (0) target = $region17
    $region16: #{tpu_custom_call.1} parent=1 // pred_region
      _
    $region17: #{tpu_custom_call.1} parent=1 // pred_fallthru
      _
    // Predicated region
    $region18: #{tpu_custom_call.1} parent=1 // pred_check
      _
    $region19: #{tpu_custom_call.1} parent=1 // pred_check_branch
      %46 = sbr.rel (0) target = $region21
    $region20: #{tpu_custom_call.1} parent=1 // pred_region
      %48 = dma.done [#allocation3], 1024
    $region21: #{tpu_custom_call.1} parent=1 // pred_fallthru
      _
    // Predicated region
    $region22: #{tpu_custom_call.1} parent=1 // pred_check
      _
    $region23: #{tpu_custom_call.1} parent=1 // pred_check_branch
      %50 = sbr.rel (0) target = $region25
    $region24: #{tpu_custom_call.1} parent=1 // pred_region
      %52 = dma.done [#allocation6], 1024
    $region25: #{tpu_custom_call.1} parent=1 // pred_fallthru
      _
    %v53 = vld [vmem:[%s0] sm:$0xff]
    %v54 = vld [vmem:[%s0 + $0x8] sm:$0xff]
    %v55 = vld [vmem:[%s0 + $0x10] sm:$0xff]
    %v56 = vld [vmem:[%s0 + $0x18] sm:$0xff]
    %v57 = vld [vmem:[%s0 + $0x20] sm:$0xff]
    %v58 = vld [vmem:[%s0 + $0x28] sm:$0xff]
    %v59 = vld [vmem:[%s0 + $0x30] sm:$0xff]
    %v60 = vld [vmem:[%s0 + $0x38] sm:$0xff]
    %v61 = vld [vmem:[#allocation2] sm:$0xff]
    %v62 = vld [vmem:[#allocation2 + $0x8] sm:$0xff]
    %v63 = vld [vmem:[#allocation2 + $0x10] sm:$0xff]
    %v64 = vld [vmem:[#allocation2 + $0x18] sm:$0xff]
    %v65 = vld [vmem:[#allocation2 + $0x20] sm:$0xff]
    %v66 = vld [vmem:[#allocation2 + $0x28] sm:$0xff]
    %v67 = vld [vmem:[#allocation2 + $0x30] sm:$0xff]
    %v68 = vld [vmem:[#allocation2 + $0x38] sm:$0xff]
    %vm69 = vcmask 261120
    %v71 = vsel %vm69, %v53, 0
    %v74 = vsel %vm69, %v61, 0
    %76 = vmatpush.xpose.msra.mxu0 0.0
    %77 = vmatpush.xpose.msra.mxu0 0.0
    %78 = vmatpush.xpose.msra.mxu0 0.0
    %79 = vmatpush.xpose.msra.mxu0 0.0
    %80 = vmatpush.xpose.msra.mxu0 0.0
    %81 = vmatpush.xpose.msra.mxu0 0.0
    %82 = vmatpush.xpose.msra.mxu0 0.0
    %83 = vmatpush.xpose.msra.mxu0 0.0
    %84 = vmatpush.xpose.msra.mxu0 0.0
    %85 = vmatpush.xpose.msra.mxu0 0.0
    %86 = vmatpush.xpose.msra.mxu0 0.0
    %87 = vmatpush.xpose.msra.mxu0 0.0
    %88 = vmatpush.xpose.msra.mxu0 0.0
    %89 = vmatpush.xpose.msra.mxu0 0.0
    %90 = vmatpush.xpose.msra.mxu0 0.0
    %91 = vmatpush.xpose.msra.mxu0 %v74
    %92 = vmatmul.f32.gmra.mxu0 %v71
    %v93 = vpop.f32.mrf.mxu0
    %v94 = vadd.f32 0.0, %v93
    %95 = vdwg.mxu0
    %v97 = vsel %vm69, %v54, 0
    %v100 = vsel %vm69, %v62, 0
    %102 = vmatpush.xpose.msra.mxu0 0.0
    %103 = vmatpush.xpose.msra.mxu0 0.0
    %104 = vmatpush.xpose.msra.mxu0 0.0
    %105 = vmatpush.xpose.msra.mxu0 0.0
    %106 = vmatpush.xpose.msra.mxu0 0.0
    %107 = vmatpush.xpose.msra.mxu0 0.0
    %108 = vmatpush.xpose.msra.mxu0 0.0
    %109 = vmatpush.xpose.msra.mxu0 0.0
    %110 = vmatpush.xpose.msra.mxu0 0.0
    %111 = vmatpush.xpose.msra.mxu0 0.0
    %112 = vmatpush.xpose.msra.mxu0 0.0
    %113 = vmatpush.xpose.msra.mxu0 0.0
    %114 = vmatpush.xpose.msra.mxu0 0.0
    %115 = vmatpush.xpose.msra.mxu0 0.0
    %116 = vmatpush.xpose.msra.mxu0 0.0
    %117 = vmatpush.xpose.msra.mxu0 %v100
    %118 = vmatmul.f32.gmra.mxu0 %v97
    %v119 = vpop.f32.mrf.mxu0
    %v120 = vadd.f32 0.0, %v119
    %121 = vdwg.mxu0
    %v123 = vsel %vm69, %v55, 0
    %v126 = vsel %vm69, %v63, 0
    %128 = vmatpush.xpose.msra.mxu0 0.0
    %129 = vmatpush.xpose.msra.mxu0 0.0
    %130 = vmatpush.xpose.msra.mxu0 0.0
    %131 = vmatpush.xpose.msra.mxu0 0.0
    %132 = vmatpush.xpose.msra.mxu0 0.0
    %133 = vmatpush.xpose.msra.mxu0 0.0
    %134 = vmatpush.xpose.msra.mxu0 0.0
    %135 = vmatpush.xpose.msra.mxu0 0.0
    %136 = vmatpush.xpose.msra.mxu0 0.0
    %137 = vmatpush.xpose.msra.mxu0 0.0
    %138 = vmatpush.xpose.msra.mxu0 0.0
    %139 = vmatpush.xpose.msra.mxu0 0.0
    %140 = vmatpush.xpose.msra.mxu0 0.0
    %141 = vmatpush.xpose.msra.mxu0 0.0
    %142 = vmatpush.xpose.msra.mxu0 0.0
    %143 = vmatpush.xpose.msra.mxu0 %v126
    %144 = vmatmul.f32.gmra.mxu0 %v123
    %v145 = vpop.f32.mrf.mxu0
    %v146 = vadd.f32 0.0, %v145
    %147 = vdwg.mxu0
    %v149 = vsel %vm69, %v56, 0
    %v152 = vsel %vm69, %v64, 0
    %154 = vmatpush.xpose.msra.mxu0 0.0
    %155 = vmatpush.xpose.msra.mxu0 0.0
    %156 = vmatpush.xpose.msra.mxu0 0.0
    %157 = vmatpush.xpose.msra.mxu0 0.0
    %158 = vmatpush.xpose.msra.mxu0 0.0
    %159 = vmatpush.xpose.msra.mxu0 0.0
    %160 = vmatpush.xpose.msra.mxu0 0.0
    %161 = vmatpush.xpose.msra.mxu0 0.0
    %162 = vmatpush.xpose.msra.mxu0 0.0
    %163 = vmatpush.xpose.msra.mxu0 0.0
    %164 = vmatpush.xpose.msra.mxu0 0.0
    %165 = vmatpush.xpose.msra.mxu0 0.0
    %166 = vmatpush.xpose.msra.mxu0 0.0
    %167 = vmatpush.xpose.msra.mxu0 0.0
    %168 = vmatpush.xpose.msra.mxu0 0.0
    %169 = vmatpush.xpose.msra.mxu0 %v152
    %170 = vmatmul.f32.gmra.mxu0 %v149
    %v171 = vpop.f32.mrf.mxu0
    %v172 = vadd.f32 0.0, %v171
    %173 = vdwg.mxu0
    %v175 = vsel %vm69, %v57, 0
    %v178 = vsel %vm69, %v65, 0
    %180 = vmatpush.xpose.msra.mxu0 0.0
    %181 = vmatpush.xpose.msra.mxu0 0.0
    %182 = vmatpush.xpose.msra.mxu0 0.0
    %183 = vmatpush.xpose.msra.mxu0 0.0
    %184 = vmatpush.xpose.msra.mxu0 0.0
    %185 = vmatpush.xpose.msra.mxu0 0.0
    %186 = vmatpush.xpose.msra.mxu0 0.0
    %187 = vmatpush.xpose.msra.mxu0 0.0
    %188 = vmatpush.xpose.msra.mxu0 0.0
    %189 = vmatpush.xpose.msra.mxu0 0.0
    %190 = vmatpush.xpose.msra.mxu0 0.0
    %191 = vmatpush.xpose.msra.mxu0 0.0
    %192 = vmatpush.xpose.msra.mxu0 0.0
    %193 = vmatpush.xpose.msra.mxu0 0.0
    %194 = vmatpush.xpose.msra.mxu0 0.0
    %195 = vmatpush.xpose.msra.mxu0 %v178
    %196 = vmatmul.f32.gmra.mxu0 %v175
    %v197 = vpop.f32.mrf.mxu0
    %v198 = vadd.f32 0.0, %v197
    %199 = vdwg.mxu0
    %v201 = vsel %vm69, %v58, 0
    %v204 = vsel %vm69, %v66, 0
    %206 = vmatpush.xpose.msra.mxu0 0.0
    %207 = vmatpush.xpose.msra.mxu0 0.0
    %208 = vmatpush.xpose.msra.mxu0 0.0
    %209 = vmatpush.xpose.msra.mxu0 0.0
    %210 = vmatpush.xpose.msra.mxu0 0.0
    %211 = vmatpush.xpose.msra.mxu0 0.0
    %212 = vmatpush.xpose.msra.mxu0 0.0
    %213 = vmatpush.xpose.msra.mxu0 0.0
    %214 = vmatpush.xpose.msra.mxu0 0.0
    %215 = vmatpush.xpose.msra.mxu0 0.0
    %216 = vmatpush.xpose.msra.mxu0 0.0
    %217 = vmatpush.xpose.msra.mxu0 0.0
    %218 = vmatpush.xpose.msra.mxu0 0.0
    %219 = vmatpush.xpose.msra.mxu0 0.0
    %220 = vmatpush.xpose.msra.mxu0 0.0
    %221 = vmatpush.xpose.msra.mxu0 %v204
    %222 = vmatmul.f32.gmra.mxu0 %v201
    %v223 = vpop.f32.mrf.mxu0
    %v224 = vadd.f32 0.0, %v223
    %225 = vdwg.mxu0
    %v227 = vsel %vm69, %v59, 0
    %v230 = vsel %vm69, %v67, 0
    %232 = vmatpush.xpose.msra.mxu0 0.0
    %233 = vmatpush.xpose.msra.mxu0 0.0
    %234 = vmatpush.xpose.msra.mxu0 0.0
    %235 = vmatpush.xpose.msra.mxu0 0.0
    %236 = vmatpush.xpose.msra.mxu0 0.0
    %237 = vmatpush.xpose.msra.mxu0 0.0
    %238 = vmatpush.xpose.msra.mxu0 0.0
    %239 = vmatpush.xpose.msra.mxu0 0.0
    %240 = vmatpush.xpose.msra.mxu0 0.0
    %241 = vmatpush.xpose.msra.mxu0 0.0
    %242 = vmatpush.xpose.msra.mxu0 0.0
    %243 = vmatpush.xpose.msra.mxu0 0.0
    %244 = vmatpush.xpose.msra.mxu0 0.0
    %245 = vmatpush.xpose.msra.mxu0 0.0
    %246 = vmatpush.xpose.msra.mxu0 0.0
    %247 = vmatpush.xpose.msra.mxu0 %v230
    %248 = vmatmul.f32.gmra.mxu0 %v227
    %v249 = vpop.f32.mrf.mxu0
    %v250 = vadd.f32 0.0, %v249
    %251 = vdwg.mxu0
    %v253 = vsel %vm69, %v60, 0
    %v256 = vsel %vm69, %v68, 0
    %258 = vmatpush.xpose.msra.mxu0 0.0
    %259 = vmatpush.xpose.msra.mxu0 0.0
    %260 = vmatpush.xpose.msra.mxu0 0.0
    %261 = vmatpush.xpose.msra.mxu0 0.0
    %262 = vmatpush.xpose.msra.mxu0 0.0
    %263 = vmatpush.xpose.msra.mxu0 0.0
    %264 = vmatpush.xpose.msra.mxu0 0.0
    %265 = vmatpush.xpose.msra.mxu0 0.0
    %266 = vmatpush.xpose.msra.mxu0 0.0
    %267 = vmatpush.xpose.msra.mxu0 0.0
    %268 = vmatpush.xpose.msra.mxu0 0.0
    %269 = vmatpush.xpose.msra.mxu0 0.0
    %270 = vmatpush.xpose.msra.mxu0 0.0
    %271 = vmatpush.xpose.msra.mxu0 0.0
    %272 = vmatpush.xpose.msra.mxu0 0.0
    %273 = vmatpush.xpose.msra.mxu0 %v256
    %274 = vmatmul.f32.gmra.mxu0 %v253
    %v275 = vpop.f32.mrf.mxu0
    %v276 = vadd.f32 0.0, %v275
    %277 = vdwg.mxu0
    %v278 = vmul.f32 %v94, 0.17677669
    %v279 = vmul.f32 %v120, 0.17677669
    %v280 = vmul.f32 %v146, 0.17677669
    %v281 = vmul.f32 %v172, 0.17677669
    %v282 = vmul.f32 %v198, 0.17677669
    %v283 = vmul.f32 %v224, 0.17677669
    %v284 = vmul.f32 %v250, 0.17677669
    %v285 = vmul.f32 %v276, 0.17677669
    %v286 = vld [vmem:[%s3] sm:$0xff]
    %v287 = vld [vmem:[%s3 + $0x8] sm:$0xff]
    %v288 = vld [vmem:[%s3 + $0x10] sm:$0xff]
    %v289 = vld [vmem:[%s3 + $0x18] sm:$0xff]
    %v290 = vld [vmem:[%s3 + $0x20] sm:$0xff]
    %v291 = vld [vmem:[%s3 + $0x28] sm:$0xff]
    %v292 = vld [vmem:[%s3 + $0x30] sm:$0xff]
    %v293 = vld [vmem:[%s3 + $0x38] sm:$0xff]
    %vm294 = vcmp.ne.s32.totalorder %v286, 0
    %vm295 = vcmp.ne.s32.totalorder %v287, 0
    %vm296 = vcmp.ne.s32.totalorder %v288, 0
    %vm297 = vcmp.ne.s32.totalorder %v289, 0
    %vm298 = vcmp.ne.s32.totalorder %v290, 0
    %vm299 = vcmp.ne.s32.totalorder %v291, 0
    %vm300 = vcmp.ne.s32.totalorder %v292, 0
    %vm301 = vcmp.ne.s32.totalorder %v293, 0
    %v302 = vsel %vm294, -1e+09, %v278
    %v303 = vsel %vm295, -1e+09, %v279
    %v304 = vsel %vm296, -1e+09, %v280
    %v305 = vsel %vm297, -1e+09, %v281
    %v306 = vsel %vm298, -1e+09, %v282
    %v307 = vsel %vm299, -1e+09, %v283
    %v308 = vsel %vm300, -1e+09, %v284
    %v309 = vsel %vm301, -1e+09, %v285
    %vm310 = vcmask 64512
    %v311 = vsel %vm310, %v302, -inf
    %312 = vmax.xlane.f32.xlu0 %v311
    %v313 = vpop.xlane.xlu0 %312
    %v314 = vsel %vm310, %v303, -inf
    %315 = vmax.xlane.f32.xlu0 %v314
    %v316 = vpop.xlane.xlu0 %315
    %v317 = vsel %vm310, %v304, -inf
    %318 = vmax.xlane.f32.xlu0 %v317
    %v319 = vpop.xlane.xlu0 %318
    %v320 = vsel %vm310, %v305, -inf
    %321 = vmax.xlane.f32.xlu0 %v320
    %v322 = vpop.xlane.xlu0 %321
    %v323 = vsel %vm310, %v306, -inf
    %324 = vmax.xlane.f32.xlu0 %v323
    %v325 = vpop.xlane.xlu0 %324
    %v326 = vsel %vm310, %v307, -inf
    %327 = vmax.xlane.f32.xlu0 %v326
    %v328 = vpop.xlane.xlu0 %327
    %v329 = vsel %vm310, %v308, -inf
    %330 = vmax.xlane.f32.xlu0 %v329
    %v331 = vpop.xlane.xlu0 %330
    %v332 = vsel %vm310, %v309, -inf
    %333 = vmax.xlane.f32.xlu0 %v332
    %v334 = vpop.xlane.xlu0 %333
    %v335 = vsub.f32 %v302, %v313
    %v336 = vsub.f32 %v303, %v316
    %v337 = vsub.f32 %v304, %v319
    %v338 = vsub.f32 %v305, %v322
    %v339 = vsub.f32 %v306, %v325
    %v340 = vsub.f32 %v307, %v328
    %v341 = vsub.f32 %v308, %v331
    %v342 = vsub.f32 %v309, %v334
    %v343 = vmul.f32 %v335, 1.442695
    %v344 = vpow.pop %v343
    %v345 = vmul.f32 %v336, 1.442695
    %v346 = vpow.pop %v345
    %v347 = vmul.f32 %v337, 1.442695
    %v348 = vpow.pop %v347
    %v349 = vmul.f32 %v338, 1.442695
    %v350 = vpow.pop %v349
    %v351 = vmul.f32 %v339, 1.442695
    %v352 = vpow.pop %v351
    %v353 = vmul.f32 %v340, 1.442695
    %v354 = vpow.pop %v353
    %v355 = vmul.f32 %v341, 1.442695
    %v356 = vpow.pop %v355
    %v357 = vmul.f32 %v342, 1.442695
    %v358 = vpow.pop %v357
    %v359 = vsel %vm310, %v344, 0.0
    %360 = vadd.xlane.f32.xlu0 %v359
    %v361 = vpop.xlane.xlu0 %360
    %v362 = vsel %vm310, %v346, 0.0
    %363 = vadd.xlane.f32.xlu0 %v362
    %v364 = vpop.xlane.xlu0 %363
    %v365 = vsel %vm310, %v348, 0.0
    %366 = vadd.xlane.f32.xlu0 %v365
    %v367 = vpop.xlane.xlu0 %366
    %v368 = vsel %vm310, %v350, 0.0
    %369 = vadd.xlane.f32.xlu0 %v368
    %v370 = vpop.xlane.xlu0 %369
    %v371 = vsel %vm310, %v352, 0.0
    %372 = vadd.xlane.f32.xlu0 %v371
    %v373 = vpop.xlane.xlu0 %372
    %v374 = vsel %vm310, %v354, 0.0
    %375 = vadd.xlane.f32.xlu0 %v374
    %v376 = vpop.xlane.xlu0 %375
    %v377 = vsel %vm310, %v356, 0.0
    %378 = vadd.xlane.f32.xlu0 %v377
    %v379 = vpop.xlane.xlu0 %378
    %v380 = vsel %vm310, %v358, 0.0
    %381 = vadd.xlane.f32.xlu0 %v380
    %v382 = vpop.xlane.xlu0 %381
    %v383 = vrcp.pop %v361
    %v384 = vmul.f32 %v361, %v383
    %v385 = vsub.f32 1.0, %v384
    %v386 = vmul.f32 %v383, %v385
    %v387 = vadd.f32 %v383, %v386
    %vm388 = vweird.f32 %v361
    %vm389 = vweird.f32 %v383
    %vm390 = vmor %vm388, %vm389
    %v391 = vsel %vm390, %v383, %v387
    %v392 = vand.u32 2147483647, %v361
    %vm393 = vcmp.eq.f32.partialorder %v392, 8.507059e+37
    %v394 = vand.u32 %v361, 2147483648
    %v395 = vor.u32 1.1754944e-38, %v394
    %v396 = vsel %vm393, %v395, %v391
    %v397 = vmul.f32 %v344, %v396
    %v398 = vrcp.pop %v364
    %v399 = vmul.f32 %v364, %v398
    %v400 = vsub.f32 1.0, %v399
    %v401 = vmul.f32 %v398, %v400
    %v402 = vadd.f32 %v398, %v401
    %vm403 = vweird.f32 %v364
    %vm404 = vweird.f32 %v398
    %vm405 = vmor %vm403, %vm404
    %v406 = vsel %vm405, %v398, %v402
    %v407 = vand.u32 2147483647, %v364
    %vm408 = vcmp.eq.f32.partialorder %v407, 8.507059e+37
    %v409 = vand.u32 %v364, 2147483648
    %v410 = vor.u32 1.1754944e-38, %v409
    %v411 = vsel %vm408, %v410, %v406
    %v412 = vmul.f32 %v346, %v411
    %v413 = vrcp.pop %v367
    %v414 = vmul.f32 %v367, %v413
    %v415 = vsub.f32 1.0, %v414
    %v416 = vmul.f32 %v413, %v415
    %v417 = vadd.f32 %v413, %v416
    %vm418 = vweird.f32 %v367
    %vm419 = vweird.f32 %v413
    %vm420 = vmor %vm418, %vm419
    %v421 = vsel %vm420, %v413, %v417
    %v422 = vand.u32 2147483647, %v367
    %vm423 = vcmp.eq.f32.partialorder %v422, 8.507059e+37
    %v424 = vand.u32 %v367, 2147483648
    %v425 = vor.u32 1.1754944e-38, %v424
    %v426 = vsel %vm423, %v425, %v421
    %v427 = vmul.f32 %v348, %v426
    %v428 = vrcp.pop %v370
    %v429 = vmul.f32 %v370, %v428
    %v430 = vsub.f32 1.0, %v429
    %v431 = vmul.f32 %v428, %v430
    %v432 = vadd.f32 %v428, %v431
    %vm433 = vweird.f32 %v370
    %vm434 = vweird.f32 %v428
    %vm435 = vmor %vm433, %vm434
    %v436 = vsel %vm435, %v428, %v432
    %v437 = vand.u32 2147483647, %v370
    %vm438 = vcmp.eq.f32.partialorder %v437, 8.507059e+37
    %v439 = vand.u32 %v370, 2147483648
    %v440 = vor.u32 1.1754944e-38, %v439
    %v441 = vsel %vm438, %v440, %v436
    %v442 = vmul.f32 %v350, %v441
    %v443 = vrcp.pop %v373
    %v444 = vmul.f32 %v373, %v443
    %v445 = vsub.f32 1.0, %v444
    %v446 = vmul.f32 %v443, %v445
    %v447 = vadd.f32 %v443, %v446
    %vm448 = vweird.f32 %v373
    %vm449 = vweird.f32 %v443
    %vm450 = vmor %vm448, %vm449
    %v451 = vsel %vm450, %v443, %v447
    %v452 = vand.u32 2147483647, %v373
    %vm453 = vcmp.eq.f32.partialorder %v452, 8.507059e+37
    %v454 = vand.u32 %v373, 2147483648
    %v455 = vor.u32 1.1754944e-38, %v454
    %v456 = vsel %vm453, %v455, %v451
    %v457 = vmul.f32 %v352, %v456
    %v458 = vrcp.pop %v376
    %v459 = vmul.f32 %v376, %v458
    %v460 = vsub.f32 1.0, %v459
    %v461 = vmul.f32 %v458, %v460
    %v462 = vadd.f32 %v458, %v461
    %vm463 = vweird.f32 %v376
    %vm464 = vweird.f32 %v458
    %vm465 = vmor %vm463, %vm464
    %v466 = vsel %vm465, %v458, %v462
    %v467 = vand.u32 2147483647, %v376
    %vm468 = vcmp.eq.f32.partialorder %v467, 8.507059e+37
    %v469 = vand.u32 %v376, 2147483648
    %v470 = vor.u32 1.1754944e-38, %v469
    %v471 = vsel %vm468, %v470, %v466
    %v472 = vmul.f32 %v354, %v471
    %v473 = vrcp.pop %v379
    %v474 = vmul.f32 %v379, %v473
    %v475 = vsub.f32 1.0, %v474
    %v476 = vmul.f32 %v473, %v475
    %v477 = vadd.f32 %v473, %v476
    %vm478 = vweird.f32 %v379
    %vm479 = vweird.f32 %v473
    %vm480 = vmor %vm478, %vm479
    %v481 = vsel %vm480, %v473, %v477
    %v482 = vand.u32 2147483647, %v379
    %vm483 = vcmp.eq.f32.partialorder %v482, 8.507059e+37
    %v484 = vand.u32 %v379, 2147483648
    %v485 = vor.u32 1.1754944e-38, %v484
    %v486 = vsel %vm483, %v485, %v481
    %v487 = vmul.f32 %v356, %v486
    %v488 = vrcp.pop %v382
    %v489 = vmul.f32 %v382, %v488
    %v490 = vsub.f32 1.0, %v489
    %v491 = vmul.f32 %v488, %v490
    %v492 = vadd.f32 %v488, %v491
    %vm493 = vweird.f32 %v382
    %vm494 = vweird.f32 %v488
    %vm495 = vmor %vm493, %vm494
    %v496 = vsel %vm495, %v488, %v492
    %v497 = vand.u32 2147483647, %v382
    %vm498 = vcmp.eq.f32.partialorder %v497, 8.507059e+37
    %v499 = vand.u32 %v382, 2147483648
    %v500 = vor.u32 1.1754944e-38, %v499
    %v501 = vsel %vm498, %v500, %v496
    %v502 = vmul.f32 %v358, %v501
    %v503 = vld [vmem:[#allocation5] sm:$0xff]
    %v504 = vld [vmem:[#allocation5 + $0x8] sm:$0xff]
    %v505 = vld [vmem:[#allocation5 + $0x10] sm:$0xff]
    %v506 = vld [vmem:[#allocation5 + $0x18] sm:$0xff]
    %v507 = vld [vmem:[#allocation5 + $0x20] sm:$0xff]
    %v508 = vld [vmem:[#allocation5 + $0x28] sm:$0xff]
    %v509 = vld [vmem:[#allocation5 + $0x30] sm:$0xff]
    %v510 = vld [vmem:[#allocation5 + $0x38] sm:$0xff]
    %v512 = vsel %vm310, %v397, 0
    %514 = vmatpush.msra.mxu0 0.0
    %515 = vmatpush.msra.mxu0 0.0
    %516 = vmatpush.msra.mxu0 0.0
    %517 = vmatpush.msra.mxu0 0.0
    %518 = vmatpush.msra.mxu0 0.0
    %519 = vmatpush.msra.mxu0 0.0
    %520 = vmatpush.msra.mxu0 0.0
    %521 = vmatpush.msra.mxu0 0.0
    %522 = vmatpush.msra.mxu0 0.0
    %523 = vmatpush.msra.mxu0 0.0
    %524 = vmatpush.msra.mxu0 0.0
    %525 = vmatpush.msra.mxu0 0.0
    %526 = vmatpush.msra.mxu0 0.0
    %527 = vmatpush.msra.mxu0 0.0
    %528 = vmatpush.msra.mxu0 0.0
    %529 = vmatpush.msra.mxu0 %v503
    %530 = vmatmul.f32.gmra.mxu0 %v512
    %v531 = vpop.f32.mrf.mxu0
    %v532 = vadd.f32 0.0, %v531
    %533 = vdwg.mxu0
    %v535 = vsel %vm310, %v412, 0
    %537 = vmatpush.msra.mxu0 0.0
    %538 = vmatpush.msra.mxu0 0.0
    %539 = vmatpush.msra.mxu0 0.0
    %540 = vmatpush.msra.mxu0 0.0
    %541 = vmatpush.msra.mxu0 0.0
    %542 = vmatpush.msra.mxu0 0.0
    %543 = vmatpush.msra.mxu0 0.0
    %544 = vmatpush.msra.mxu0 0.0
    %545 = vmatpush.msra.mxu0 0.0
    %546 = vmatpush.msra.mxu0 0.0
    %547 = vmatpush.msra.mxu0 0.0
    %548 = vmatpush.msra.mxu0 0.0
    %549 = vmatpush.msra.mxu0 0.0
    %550 = vmatpush.msra.mxu0 0.0
    %551 = vmatpush.msra.mxu0 0.0
    %552 = vmatpush.msra.mxu0 %v504
    %553 = vmatmul.f32.gmra.mxu0 %v535
    %v554 = vpop.f32.mrf.mxu0
    %v555 = vadd.f32 0.0, %v554
    %556 = vdwg.mxu0
    %v558 = vsel %vm310, %v427, 0
    %560 = vmatpush.msra.mxu0 0.0
    %561 = vmatpush.msra.mxu0 0.0
    %562 = vmatpush.msra.mxu0 0.0
    %563 = vmatpush.msra.mxu0 0.0
    %564 = vmatpush.msra.mxu0 0.0
    %565 = vmatpush.msra.mxu0 0.0
    %566 = vmatpush.msra.mxu0 0.0
    %567 = vmatpush.msra.mxu0 0.0
    %568 = vmatpush.msra.mxu0 0.0
    %569 = vmatpush.msra.mxu0 0.0
    %570 = vmatpush.msra.mxu0 0.0
    %571 = vmatpush.msra.mxu0 0.0
    %572 = vmatpush.msra.mxu0 0.0
    %573 = vmatpush.msra.mxu0 0.0
    %574 = vmatpush.msra.mxu0 0.0
    %575 = vmatpush.msra.mxu0 %v505
    %576 = vmatmul.f32.gmra.mxu0 %v558
    %v577 = vpop.f32.mrf.mxu0
    %v578 = vadd.f32 0.0, %v577
    %579 = vdwg.mxu0
    %v581 = vsel %vm310, %v442, 0
    %583 = vmatpush.msra.mxu0 0.0
    %584 = vmatpush.msra.mxu0 0.0
    %585 = vmatpush.msra.mxu0 0.0
    %586 = vmatpush.msra.mxu0 0.0
    %587 = vmatpush.msra.mxu0 0.0
    %588 = vmatpush.msra.mxu0 0.0
    %589 = vmatpush.msra.mxu0 0.0
    %590 = vmatpush.msra.mxu0 0.0
    %591 = vmatpush.msra.mxu0 0.0
    %592 = vmatpush.msra.mxu0 0.0
    %593 = vmatpush.msra.mxu0 0.0
    %594 = vmatpush.msra.mxu0 0.0
    %595 = vmatpush.msra.mxu0 0.0
    %596 = vmatpush.msra.mxu0 0.0
    %597 = vmatpush.msra.mxu0 0.0
    %598 = vmatpush.msra.mxu0 %v506
    %599 = vmatmul.f32.gmra.mxu0 %v581
    %v600 = vpop.f32.mrf.mxu0
    %v601 = vadd.f32 0.0, %v600
    %602 = vdwg.mxu0
    %v604 = vsel %vm310, %v457, 0
    %606 = vmatpush.msra.mxu0 0.0
    %607 = vmatpush.msra.mxu0 0.0
    %608 = vmatpush.msra.mxu0 0.0
    %609 = vmatpush.msra.mxu0 0.0
    %610 = vmatpush.msra.mxu0 0.0
    %611 = vmatpush.msra.mxu0 0.0
    %612 = vmatpush.msra.mxu0 0.0
    %613 = vmatpush.msra.mxu0 0.0
    %614 = vmatpush.msra.mxu0 0.0
    %615 = vmatpush.msra.mxu0 0.0
    %616 = vmatpush.msra.mxu0 0.0
    %617 = vmatpush.msra.mxu0 0.0
    %618 = vmatpush.msra.mxu0 0.0
    %619 = vmatpush.msra.mxu0 0.0
    %620 = vmatpush.msra.mxu0 0.0
    %621 = vmatpush.msra.mxu0 %v507
    %622 = vmatmul.f32.gmra.mxu0 %v604
    %v623 = vpop.f32.mrf.mxu0
    %v624 = vadd.f32 0.0, %v623
    %625 = vdwg.mxu0
    %v627 = vsel %vm310, %v472, 0
    %629 = vmatpush.msra.mxu0 0.0
    %630 = vmatpush.msra.mxu0 0.0
    %631 = vmatpush.msra.mxu0 0.0
    %632 = vmatpush.msra.mxu0 0.0
    %633 = vmatpush.msra.mxu0 0.0
    %634 = vmatpush.msra.mxu0 0.0
    %635 = vmatpush.msra.mxu0 0.0
    %636 = vmatpush.msra.mxu0 0.0
    %637 = vmatpush.msra.mxu0 0.0
    %638 = vmatpush.msra.mxu0 0.0
    %639 = vmatpush.msra.mxu0 0.0
    %640 = vmatpush.msra.mxu0 0.0
    %641 = vmatpush.msra.mxu0 0.0
    %642 = vmatpush.msra.mxu0 0.0
    %643 = vmatpush.msra.mxu0 0.0
    %644 = vmatpush.msra.mxu0 %v508
    %645 = vmatmul.f32.gmra.mxu0 %v627
    %v646 = vpop.f32.mrf.mxu0
    %v647 = vadd.f32 0.0, %v646
    %648 = vdwg.mxu0
    %v650 = vsel %vm310, %v487, 0
    %652 = vmatpush.msra.mxu0 0.0
    %653 = vmatpush.msra.mxu0 0.0
    %654 = vmatpush.msra.mxu0 0.0
    %655 = vmatpush.msra.mxu0 0.0
    %656 = vmatpush.msra.mxu0 0.0
    %657 = vmatpush.msra.mxu0 0.0
    %658 = vmatpush.msra.mxu0 0.0
    %659 = vmatpush.msra.mxu0 0.0
    %660 = vmatpush.msra.mxu0 0.0
    %661 = vmatpush.msra.mxu0 0.0
    %662 = vmatpush.msra.mxu0 0.0
    %663 = vmatpush.msra.mxu0 0.0
    %664 = vmatpush.msra.mxu0 0.0
    %665 = vmatpush.msra.mxu0 0.0
    %666 = vmatpush.msra.mxu0 0.0
    %667 = vmatpush.msra.mxu0 %v509
    %668 = vmatmul.f32.gmra.mxu0 %v650
    %v669 = vpop.f32.mrf.mxu0
    %v670 = vadd.f32 0.0, %v669
    %671 = vdwg.mxu0
    %v673 = vsel %vm310, %v502, 0
    %675 = vmatpush.msra.mxu0 0.0
    %676 = vmatpush.msra.mxu0 0.0
    %677 = vmatpush.msra.mxu0 0.0
    %678 = vmatpush.msra.mxu0 0.0
    %679 = vmatpush.msra.mxu0 0.0
    %680 = vmatpush.msra.mxu0 0.0
    %681 = vmatpush.msra.mxu0 0.0
    %682 = vmatpush.msra.mxu0 0.0
    %683 = vmatpush.msra.mxu0 0.0
    %684 = vmatpush.msra.mxu0 0.0
    %685 = vmatpush.msra.mxu0 0.0
    %686 = vmatpush.msra.mxu0 0.0
    %687 = vmatpush.msra.mxu0 0.0
    %688 = vmatpush.msra.mxu0 0.0
    %689 = vmatpush.msra.mxu0 0.0
    %690 = vmatpush.msra.mxu0 %v510
    %691 = vmatmul.f32.gmra.mxu0 %v673
    %v692 = vpop.f32.mrf.mxu0
    %v693 = vadd.f32 0.0, %v692
    %694 = vdwg.mxu0
    %695 = vst.msk [vmem:[#allocation7] sm:$0xff] %vm69, %v532
    %696 = vst.msk [vmem:[#allocation7 + $0x8] sm:$0xff] %vm69, %v555
    %697 = vst.msk [vmem:[#allocation7 + $0x10] sm:$0xff] %vm69, %v578
    %698 = vst.msk [vmem:[#allocation7 + $0x18] sm:$0xff] %vm69, %v601
    %699 = vst.msk [vmem:[#allocation7 + $0x20] sm:$0xff] %vm69, %v624
    %700 = vst.msk [vmem:[#allocation7 + $0x28] sm:$0xff] %vm69, %v647
    %701 = vst.msk [vmem:[#allocation7 + $0x30] sm:$0xff] %vm69, %v670
    %702 = vst.msk [vmem:[#allocation7 + $0x38] sm:$0xff] %vm69, %v693
    %703 = vst.msk [vmem:[#allocation8] sm:$0xff] %vm310, %v397
    %704 = vst.msk [vmem:[#allocation8 + $0x8] sm:$0xff] %vm310, %v412
    %705 = vst.msk [vmem:[#allocation8 + $0x10] sm:$0xff] %vm310, %v427
    %706 = vst.msk [vmem:[#allocation8 + $0x18] sm:$0xff] %vm310, %v442
    %707 = vst.msk [vmem:[#allocation8 + $0x20] sm:$0xff] %vm310, %v457
    %708 = vst.msk [vmem:[#allocation8 + $0x28] sm:$0xff] %vm310, %v472
    %709 = vst.msk [vmem:[#allocation8 + $0x30] sm:$0xff] %vm310, %v487
    %710 = vst.msk [vmem:[#allocation8 + $0x38] sm:$0xff] %vm310, %v502
    // Predicated region
    $region26: #{tpu_custom_call.1} parent=1 // pred_check
      _
    $region27: #{tpu_custom_call.1} parent=1 // pred_check_branch
      %712 = sbr.rel (0) target = $region29
    $region28: #{tpu_custom_call.1} parent=1 // pred_region
      %714 = vsyncadd [#allocation4], 0
      %s715 = sshll.u32 [#allocation7], 4
      %s716 = int_to_ptr.vmem [resolvable:$true] %s715
      %s717 = sshll.u32 %s4, 4
      %s718 = int_to_ptr.hbm [resolvable:$true] %s717
      %723 = dma.vmem_to_hbm [thread:$0]  %s716, 1024, %s718, [#allocation4], 128, 128, 8
    $region29: #{tpu_custom_call.1} parent=1 // pred_fallthru
      _
    // Predicated region
    $region30: #{tpu_custom_call.1} parent=1 // pred_check
      _
    $region31: #{tpu_custom_call.1} parent=1 // pred_check_branch
      %725 = sbr.rel (0) target = $region33
    $region32: #{tpu_custom_call.1} parent=1 // pred_region
      %727 = vsyncadd [#allocation9], 0
      %s728 = sshll.u32 [#allocation8], 4
      %s729 = int_to_ptr.vmem [resolvable:$true] %s728
      %s730 = sshll.u32 %s5, 4
      %s731 = int_to_ptr.hbm [resolvable:$true] %s730
      %736 = dma.vmem_to_hbm [thread:$0]  %s729, 1024, %s731, [#allocation9], 128, 128, 8
    $region33: #{tpu_custom_call.1} parent=1 // pred_fallthru
      _
    // Predicated region
    $region34: #{tpu_custom_call.1} parent=1 // pred_check
      _
    $region35: #{tpu_custom_call.1} parent=1 // pred_check_branch
      %738 = sbr.rel (0) target = $region37
    $region36: #{tpu_custom_call.1} parent=1 // pred_region
      %740 = dma.done [#allocation4], 1024
    $region37: #{tpu_custom_call.1} parent=1 // pred_fallthru
      _
    // Predicated region
    $region38: #{tpu_custom_call.1} parent=1 // pred_check
      _
    $region39: #{tpu_custom_call.1} parent=1 // pred_check_branch
      %742 = sbr.rel (0) target = $region41
    $region40: #{tpu_custom_call.1} parent=1 // pred_region
      %744 = dma.done [#allocation9], 1024
    $region41: #{tpu_custom_call.1} parent=1 // pred_fallthru
      _
    %745 = vsyncpa [#allocation3], 1
    %746 = vsyncpa [#allocation6], 1
    %747 = vsyncpa [#allocation4], 1
    %748 = vsyncpa [#allocation9], 1

// kernel: tpu_custom_call.1
$region0: #{tpu_custom_call.1}
  #allocation0 [shape = 'u32[]', space=smem, size = 0x4, offset = 0x4, fixed_abs, tag = 'smem constant byte address 0x4 - core index']
  #allocation1 [shape = 'u32[72,128]{1,0:T(1,128)}', space=vmem, size = 0x9000, scoped, tag = 'internal scratch']
  %s0 = inlined_call_operand.vmem [shape: f32[8,8,32], index: 0, kind: input, shape index: {}]
  %s1 = inlined_call_operand.hbm [shape: f32[8,8,32], index: 1, kind: input, shape index: {}]
  %s2 = inlined_call_operand.hbm [shape: f32[8,8,32], index: 2, kind: input, shape index: {}]
  %s3 = inlined_call_operand.vmem [shape: s32[8,8,8], index: 3, kind: input, shape index: {}]
  %s4 = inlined_call_operand.hbm [shape: f32[8,8,32], index: 4, kind: output, shape index: {0}]
  %s5 = inlined_call_operand.hbm [shape: f32[8,8,8], index: 5, kind: output, shape index: {1}]
  %6 = xla_tuple %s4, %s5
  %s7 = sld [smem:[#allocation0]]
  $region42: #{tpu_custom_call.1} parent=0
    _
  %s9 = ssub.s32 1, %s7
  %s10 = scalar_select 0, %s9, %s7
  $region1: #{tpu_custom_call.1} parent=0
    #allocation2 [shape = 'u8[32768]{0}', space=vmem, size = 0x8000, scoped, tag = 'input window, operand 1, single buffered']
    #allocation3 [shape = 's32[1]{0}', space=sflag, size = 0x4, scoped, tag = 'scoped memory for tpu_custom_call.1']
    #allocation4 [shape = 's32[1]{0}', space=sflag, size = 0x4, scoped, tag = 'scoped memory for tpu_custom_call.1']
    #allocation5 [shape = 'u8[32768]{0}', space=vmem, size = 0x8000, scoped, tag = 'input window, operand 2, single buffered']
    #allocation6 [shape = 's32[1]{0}', space=sflag, size = 0x4, scoped, tag = 'scoped memory for tpu_custom_call.1']
    #allocation7 [shape = 'u8[32768]{0}', space=vmem, size = 0x8000, scoped, tag = 'output window, operand 0, single buffered']
    #allocation8 [shape = 'u8[32768]{0}', space=vmem, size = 0x8000, scoped, tag = 'output window, operand 1, single buffered']
    #allocation9 [shape = 's32[1]{0}', space=sflag, size = 0x4, scoped, tag = 'scoped memory for tpu_custom_call.1']
    %11 = vsyncpa [#allocation3], 0
    %12 = vsyncpa [#allocation6], 0
    %13 = vsyncpa [#allocation4], 0
    %14 = vsyncpa [#allocation9], 0
    // Predicated region
    $region2: #{tpu_custom_call.1} parent=1 // pred_check
      _
    $region3: #{tpu_custom_call.1} parent=1 // pred_check_branch
      %16 = sbr.rel (0) target = $region5
    $region4: #{tpu_custom_call.1} parent=1 // pred_region
      _
    $region5: #{tpu_custom_call.1} parent=1 // pred_fallthru
      _
    // Predicated region
    $region6: #{tpu_custom_call.1} parent=1 // pred_check
      _
    $region7: #{tpu_custom_call.1} parent=1 // pred_check_branch
      %18 = sbr.rel (0) target = $region9
    $region8: #{tpu_custom_call.1} parent=1 // pred_region
      %20 = vsyncadd [#allocation3], 0
      %s21 = sshll.u32 %s1, 4
      %s22 = int_to_ptr.hbm [resolvable:$true] %s21
      %s23 = sshll.u32 [#allocation2], 4
      %s24 = int_to_ptr.vmem [resolvable:$true] %s23
      %29 = dma.hbm_to_vmem [thread:$0]  %s22, 1024, %s24, [#allocation3], 128, 128, 8
    $region9: #{tpu_custom_call.1} parent=1 // pred_fallthru
      _
    // Predicated region
    $region10: #{tpu_custom_call.1} parent=1 // pred_check
      _
    $region11: #{tpu_custom_call.1} parent=1 // pred_check_branch
      %31 = sbr.rel (0) target = $region13
    $region12: #{tpu_custom_call.1} parent=1 // pred_region
      %33 = vsyncadd [#allocation6], 0
      %s34 = sshll.u32 %s2, 4
      %s35 = int_to_ptr.hbm [resolvable:$true] %s34
      %s36 = sshll.u32 [#allocation5], 4
      %s37 = int_to_ptr.vmem [resolvable:$true] %s36
      %42 = dma.hbm_to_vmem [thread:$0]  %s35, 1024, %s37, [#allocation6], 128, 128, 8
    $region13: #{tpu_custom_call.1} parent=1 // pred_fallthru
      _
    // Predicated region
    $region14: #{tpu_custom_call.1} parent=1 // pred_check
      _
    $region15: #{tpu_custom_call.1} parent=1 // pred_check_branch
      %44 = sbr.rel (0) target = $region17
    $region16: #{tpu_custom_call.1} parent=1 // pred_region
      _
    $region17: #{tpu_custom_call.1} parent=1 // pred_fallthru
      _
    // Predicated region
    $region18: #{tpu_custom_call.1} parent=1 // pred_check
      _
    $region19: #{tpu_custom_call.1} parent=1 // pred_check_branch
      %46 = sbr.rel (0) target = $region21
    $region20: #{tpu_custom_call.1} parent=1 // pred_region
      %48 = dma.done [#allocation3], 1024
    $region21: #{tpu_custom_call.1} parent=1 // pred_fallthru
      _
    // Predicated region
    $region22: #{tpu_custom_call.1} parent=1 // pred_check
      _
    $region23: #{tpu_custom_call.1} parent=1 // pred_check_branch
      %50 = sbr.rel (0) target = $region25
    $region24: #{tpu_custom_call.1} parent=1 // pred_region
      %52 = dma.done [#allocation6], 1024
    $region25: #{tpu_custom_call.1} parent=1 // pred_fallthru
      _
    %v53 = vld [vmem:[%s0] sm:$0xff]
    %v54 = vld [vmem:[%s0 + $0x8] sm:$0xff]
    %v55 = vld [vmem:[%s0 + $0x10] sm:$0xff]
    %v56 = vld [vmem:[%s0 + $0x18] sm:$0xff]
    %v57 = vld [vmem:[%s0 + $0x20] sm:$0xff]
    %v58 = vld [vmem:[%s0 + $0x28] sm:$0xff]
    %v59 = vld [vmem:[%s0 + $0x30] sm:$0xff]
    %v60 = vld [vmem:[%s0 + $0x38] sm:$0xff]
    %v61 = vld [vmem:[#allocation2] sm:$0xff]
    %v62 = vld [vmem:[#allocation2 + $0x8] sm:$0xff]
    %v63 = vld [vmem:[#allocation2 + $0x10] sm:$0xff]
    %v64 = vld [vmem:[#allocation2 + $0x18] sm:$0xff]
    %v65 = vld [vmem:[#allocation2 + $0x20] sm:$0xff]
    %v66 = vld [vmem:[#allocation2 + $0x28] sm:$0xff]
    %v67 = vld [vmem:[#allocation2 + $0x30] sm:$0xff]
    %v68 = vld [vmem:[#allocation2 + $0x38] sm:$0xff]
    %vm69 = vcmask 261120
    %v71 = vsel %vm69, %v53, 0
    %v74 = vsel %vm69, %v61, 0
    %76 = vmatpush.xpose.msra.mxu0 0.0
    %77 = vmatpush.xpose.msra.mxu0 0.0
    %78 = vmatpush.xpose.msra.mxu0 0.0
    %79 = vmatpush.xpose.msra.mxu0 0.0
    %80 = vmatpush.xpose.msra.mxu0 0.0
    %81 = vmatpush.xpose.msra.mxu0 0.0
    %82 = vmatpush.xpose.msra.mxu0 0.0
    %83 = vmatpush.xpose.msra.mxu0 0.0
    %84 = vmatpush.xpose.msra.mxu0 0.0
    %85 = vmatpush.xpose.msra.mxu0 0.0
    %86 = vmatpush.xpose.msra.mxu0 0.0
    %87 = vmatpush.xpose.msra.mxu0 0.0
    %88 = vmatpush.xpose.msra.mxu0 0.0
    %89 = vmatpush.xpose.msra.mxu0 0.0
    %90 = vmatpush.xpose.msra.mxu0 0.0
    %91 = vmatpush.xpose.msra.mxu0 %v74
    %92 = vmatmul.f32.gmra.mxu0 %v71
    %v93 = vpop.f32.mrf.mxu0
    %v94 = vadd.f32 0.0, %v93
    %95 = vdwg.mxu0
    %v97 = vsel %vm69, %v54, 0
    %v100 = vsel %vm69, %v62, 0
    %102 = vmatpush.xpose.msra.mxu0 0.0
    %103 = vmatpush.xpose.msra.mxu0 0.0
    %104 = vmatpush.xpose.msra.mxu0 0.0
    %105 = vmatpush.xpose.msra.mxu0 0.0
    %106 = vmatpush.xpose.msra.mxu0 0.0
    %107 = vmatpush.xpose.msra.mxu0 0.0
    %108 = vmatpush.xpose.msra.mxu0 0.0
    %109 = vmatpush.xpose.msra.mxu0 0.0
    %110 = vmatpush.xpose.msra.mxu0 0.0
    %111 = vmatpush.xpose.msra.mxu0 0.0
    %112 = vmatpush.xpose.msra.mxu0 0.0
    %113 = vmatpush.xpose.msra.mxu0 0.0
    %114 = vmatpush.xpose.msra.mxu0 0.0
    %115 = vmatpush.xpose.msra.mxu0 0.0
    %116 = vmatpush.xpose.msra.mxu0 0.0
    %117 = vmatpush.xpose.msra.mxu0 %v100
    %118 = vmatmul.f32.gmra.mxu0 %v97
    %v119 = vpop.f32.mrf.mxu0
    %v120 = vadd.f32 0.0, %v119
    %121 = vdwg.mxu0
    %v123 = vsel %vm69, %v55, 0
    %v126 = vsel %vm69, %v63, 0
    %128 = vmatpush.xpose.msra.mxu0 0.0
    %129 = vmatpush.xpose.msra.mxu0 0.0
    %130 = vmatpush.xpose.msra.mxu0 0.0
    %131 = vmatpush.xpose.msra.mxu0 0.0
    %132 = vmatpush.xpose.msra.mxu0 0.0
    %133 = vmatpush.xpose.msra.mxu0 0.0
    %134 = vmatpush.xpose.msra.mxu0 0.0
    %135 = vmatpush.xpose.msra.mxu0 0.0
    %136 = vmatpush.xpose.msra.mxu0 0.0
    %137 = vmatpush.xpose.msra.mxu0 0.0
    %138 = vmatpush.xpose.msra.mxu0 0.0
    %139 = vmatpush.xpose.msra.mxu0 0.0
    %140 = vmatpush.xpose.msra.mxu0 0.0
    %141 = vmatpush.xpose.msra.mxu0 0.0
    %142 = vmatpush.xpose.msra.mxu0 0.0
    %143 = vmatpush.xpose.msra.mxu0 %v126
    %144 = vmatmul.f32.gmra.mxu0 %v123
    %v145 = vpop.f32.mrf.mxu0
    %v146 = vadd.f32 0.0, %v145
    %147 = vdwg.mxu0
    %v149 = vsel %vm69, %v56, 0
    %v152 = vsel %vm69, %v64, 0
    %154 = vmatpush.xpose.msra.mxu0 0.0
    %155 = vmatpush.xpose.msra.mxu0 0.0
    %156 = vmatpush.xpose.msra.mxu0 0.0
    %157 = vmatpush.xpose.msra.mxu0 0.0
    %158 = vmatpush.xpose.msra.mxu0 0.0
    %159 = vmatpush.xpose.msra.mxu0 0.0
    %160 = vmatpush.xpose.msra.mxu0 0.0
    %161 = vmatpush.xpose.msra.mxu0 0.0
    %162 = vmatpush.xpose.msra.mxu0 0.0
    %163 = vmatpush.xpose.msra.mxu0 0.0
    %164 = vmatpush.xpose.msra.mxu0 0.0
    %165 = vmatpush.xpose.msra.mxu0 0.0
    %166 = vmatpush.xpose.msra.mxu0 0.0
    %167 = vmatpush.xpose.msra.mxu0 0.0
    %168 = vmatpush.xpose.msra.mxu0 0.0
    %169 = vmatpush.xpose.msra.mxu0 %v152
    %170 = vmatmul.f32.gmra.mxu0 %v149
    %v171 = vpop.f32.mrf.mxu0
    %v172 = vadd.f32 0.0, %v171
    %173 = vdwg.mxu0
    %v175 = vsel %vm69, %v57, 0
    %v178 = vsel %vm69, %v65, 0
    %180 = vmatpush.xpose.msra.mxu0 0.0
    %181 = vmatpush.xpose.msra.mxu0 0.0
    %182 = vmatpush.xpose.msra.mxu0 0.0
    %183 = vmatpush.xpose.msra.mxu0 0.0
    %184 = vmatpush.xpose.msra.mxu0 0.0
    %185 = vmatpush.xpose.msra.mxu0 0.0
    %186 = vmatpush.xpose.msra.mxu0 0.0
    %187 = vmatpush.xpose.msra.mxu0 0.0
    %188 = vmatpush.xpose.msra.mxu0 0.0
    %189 = vmatpush.xpose.msra.mxu0 0.0
    %190 = vmatpush.xpose.msra.mxu0 0.0
    %191 = vmatpush.xpose.msra.mxu0 0.0
    %192 = vmatpush.xpose.msra.mxu0 0.0
    %193 = vmatpush.xpose.msra.mxu0 0.0
    %194 = vmatpush.xpose.msra.mxu0 0.0
    %195 = vmatpush.xpose.msra.mxu0 %v178
    %196 = vmatmul.f32.gmra.mxu0 %v175
    %v197 = vpop.f32.mrf.mxu0
    %v198 = vadd.f32 0.0, %v197
    %199 = vdwg.mxu0
    %v201 = vsel %vm69, %v58, 0
    %v204 = vsel %vm69, %v66, 0
    %206 = vmatpush.xpose.msra.mxu0 0.0
    %207 = vmatpush.xpose.msra.mxu0 0.0
    %208 = vmatpush.xpose.msra.mxu0 0.0
    %209 = vmatpush.xpose.msra.mxu0 0.0
    %210 = vmatpush.xpose.msra.mxu0 0.0
    %211 = vmatpush.xpose.msra.mxu0 0.0
    %212 = vmatpush.xpose.msra.mxu0 0.0
    %213 = vmatpush.xpose.msra.mxu0 0.0
    %214 = vmatpush.xpose.msra.mxu0 0.0
    %215 = vmatpush.xpose.msra.mxu0 0.0
    %216 = vmatpush.xpose.msra.mxu0 0.0
    %217 = vmatpush.xpose.msra.mxu0 0.0
    %218 = vmatpush.xpose.msra.mxu0 0.0
    %219 = vmatpush.xpose.msra.mxu0 0.0
    %220 = vmatpush.xpose.msra.mxu0 0.0
    %221 = vmatpush.xpose.msra.mxu0 %v204
    %222 = vmatmul.f32.gmra.mxu0 %v201
    %v223 = vpop.f32.mrf.mxu0
    %v224 = vadd.f32 0.0, %v223
    %225 = vdwg.mxu0
    %v227 = vsel %vm69, %v59, 0
    %v230 = vsel %vm69, %v67, 0
    %232 = vmatpush.xpose.msra.mxu0 0.0
    %233 = vmatpush.xpose.msra.mxu0 0.0
    %234 = vmatpush.xpose.msra.mxu0 0.0
    %235 = vmatpush.xpose.msra.mxu0 0.0
    %236 = vmatpush.xpose.msra.mxu0 0.0
    %237 = vmatpush.xpose.msra.mxu0 0.0
    %238 = vmatpush.xpose.msra.mxu0 0.0
    %239 = vmatpush.xpose.msra.mxu0 0.0
    %240 = vmatpush.xpose.msra.mxu0 0.0
    %241 = vmatpush.xpose.msra.mxu0 0.0
    %242 = vmatpush.xpose.msra.mxu0 0.0
    %243 = vmatpush.xpose.msra.mxu0 0.0
    %244 = vmatpush.xpose.msra.mxu0 0.0
    %245 = vmatpush.xpose.msra.mxu0 0.0
    %246 = vmatpush.xpose.msra.mxu0 0.0
    %247 = vmatpush.xpose.msra.mxu0 %v230
    %248 = vmatmul.f32.gmra.mxu0 %v227
    %v249 = vpop.f32.mrf.mxu0
    %v250 = vadd.f32 0.0, %v249
    %251 = vdwg.mxu0
    %v253 = vsel %vm69, %v60, 0
    %v256 = vsel %vm69, %v68, 0
    %258 = vmatpush.xpose.msra.mxu0 0.0
    %259 = vmatpush.xpose.msra.mxu0 0.0
    %260 = vmatpush.xpose.msra.mxu0 0.0
    %261 = vmatpush.xpose.msra.mxu0 0.0
    %262 = vmatpush.xpose.msra.mxu0 0.0
    %263 = vmatpush.xpose.msra.mxu0 0.0
    %264 = vmatpush.xpose.msra.mxu0 0.0
    %265 = vmatpush.xpose.msra.mxu0 0.0
    %266 = vmatpush.xpose.msra.mxu0 0.0
    %267 = vmatpush.xpose.msra.mxu0 0.0
    %268 = vmatpush.xpose.msra.mxu0 0.0
    %269 = vmatpush.xpose.msra.mxu0 0.0
    %270 = vmatpush.xpose.msra.mxu0 0.0
    %271 = vmatpush.xpose.msra.mxu0 0.0
    %272 = vmatpush.xpose.msra.mxu0 0.0
    %273 = vmatpush.xpose.msra.mxu0 %v256
    %274 = vmatmul.f32.gmra.mxu0 %v253
    %v275 = vpop.f32.mrf.mxu0
    %v276 = vadd.f32 0.0, %v275
    %277 = vdwg.mxu0
    %v278 = vmul.f32 %v94, 0.17677669
    %v279 = vmul.f32 %v120, 0.17677669
    %v280 = vmul.f32 %v146, 0.17677669
    %v281 = vmul.f32 %v172, 0.17677669
    %v282 = vmul.f32 %v198, 0.17677669
    %v283 = vmul.f32 %v224, 0.17677669
    %v284 = vmul.f32 %v250, 0.17677669
    %v285 = vmul.f32 %v276, 0.17677669
    %v286 = vld [vmem:[%s3] sm:$0xff]
    %v287 = vld [vmem:[%s3 + $0x8] sm:$0xff]
    %v288 = vld [vmem:[%s3 + $0x10] sm:$0xff]
    %v289 = vld [vmem:[%s3 + $0x18] sm:$0xff]
    %v290 = vld [vmem:[%s3 + $0x20] sm:$0xff]
    %v291 = vld [vmem:[%s3 + $0x28] sm:$0xff]
    %v292 = vld [vmem:[%s3 + $0x30] sm:$0xff]
    %v293 = vld [vmem:[%s3 + $0x38] sm:$0xff]
    %vm294 = vcmp.ne.s32.totalorder %v286, 0
    %vm295 = vcmp.ne.s32.totalorder %v287, 0
    %vm296 = vcmp.ne.s32.totalorder %v288, 0
    %vm297 = vcmp.ne.s32.totalorder %v289, 0
    %vm298 = vcmp.ne.s32.totalorder %v290, 0
    %vm299 = vcmp.ne.s32.totalorder %v291, 0
    %vm300 = vcmp.ne.s32.totalorder %v292, 0
    %vm301 = vcmp.ne.s32.totalorder %v293, 0
    %v302 = vsel %vm294, -1e+09, %v278
    %v303 = vsel %vm295, -1e+09, %v279
    %v304 = vsel %vm296, -1e+09, %v280
    %v305 = vsel %vm297, -1e+09, %v281
    %v306 = vsel %vm298, -1e+09, %v282
    %v307 = vsel %vm299, -1e+09, %v283
    %v308 = vsel %vm300, -1e+09, %v284
    %v309 = vsel %vm301, -1e+09, %v285
    %vm310 = vcmask 64512
    %v311 = vsel %vm310, %v302, -inf
    %312 = vmax.xlane.f32.xlu0 %v311
    %v313 = vpop.xlane.xlu0 %312
    %v314 = vsel %vm310, %v303, -inf
    %315 = vmax.xlane.f32.xlu0 %v314
    %v316 = vpop.xlane.xlu0 %315
    %v317 = vsel %vm310, %v304, -inf
    %318 = vmax.xlane.f32.xlu0 %v317
    %v319 = vpop.xlane.xlu0 %318
    %v320 = vsel %vm310, %v305, -inf
    %321 = vmax.xlane.f32.xlu0 %v320
    %v322 = vpop.xlane.xlu0 %321
    %v323 = vsel %vm310, %v306, -inf
    %324 = vmax.xlane.f32.xlu0 %v323
    %v325 = vpop.xlane.xlu0 %324
    %v326 = vsel %vm310, %v307, -inf
    %327 = vmax.xlane.f32.xlu0 %v326
    %v328 = vpop.xlane.xlu0 %327
    %v329 = vsel %vm310, %v308, -inf
    %330 = vmax.xlane.f32.xlu0 %v329
    %v331 = vpop.xlane.xlu0 %330
    %v332 = vsel %vm310, %v309, -inf
    %333 = vmax.xlane.f32.xlu0 %v332
    %v334 = vpop.xlane.xlu0 %333
    %v335 = vsub.f32 %v302, %v313
    %v336 = vsub.f32 %v303, %v316
    %v337 = vsub.f32 %v304, %v319
    %v338 = vsub.f32 %v305, %v322
    %v339 = vsub.f32 %v306, %v325
    %v340 = vsub.f32 %v307, %v328
    %v341 = vsub.f32 %v308, %v331
    %v342 = vsub.f32 %v309, %v334
    %v343 = vmul.f32 %v335, 1.442695
    %v344 = vpow.pop %v343
    %v345 = vmul.f32 %v336, 1.442695
    %v346 = vpow.pop %v345
    %v347 = vmul.f32 %v337, 1.442695
    %v348 = vpow.pop %v347
    %v349 = vmul.f32 %v338, 1.442695
    %v350 = vpow.pop %v349
    %v351 = vmul.f32 %v339, 1.442695
    %v352 = vpow.pop %v351
    %v353 = vmul.f32 %v340, 1.442695
    %v354 = vpow.pop %v353
    %v355 = vmul.f32 %v341, 1.442695
    %v356 = vpow.pop %v355
    %v357 = vmul.f32 %v342, 1.442695
    %v358 = vpow.pop %v357
    %v359 = vsel %vm310, %v344, 0.0
    %360 = vadd.xlane.f32.xlu0 %v359
    %v361 = vpop.xlane.xlu0 %360
    %v362 = vsel %vm310, %v346, 0.0
    %363 = vadd.xlane.f32.xlu0 %v362
    %v364 = vpop.xlane.xlu0 %363
    %v365 = vsel %vm310, %v348, 0.0
    %366 = vadd.xlane.f32.xlu0 %v365
    %v367 = vpop.xlane.xlu0 %366
    %v368 = vsel %vm310, %v350, 0.0
    %369 = vadd.xlane.f32.xlu0 %v368
    %v370 = vpop.xlane.xlu0 %369
    %v371 = vsel %vm310, %v352, 0.0
    %372 = vadd.xlane.f32.xlu0 %v371
    %v373 = vpop.xlane.xlu0 %372
    %v374 = vsel %vm310, %v354, 0.0
    %375 = vadd.xlane.f32.xlu0 %v374
    %v376 = vpop.xlane.xlu0 %375
    %v377 = vsel %vm310, %v356, 0.0
    %378 = vadd.xlane.f32.xlu0 %v377
    %v379 = vpop.xlane.xlu0 %378
    %v380 = vsel %vm310, %v358, 0.0
    %381 = vadd.xlane.f32.xlu0 %v380
    %v382 = vpop.xlane.xlu0 %381
    %v383 = vrcp.pop %v361
    %v384 = vmul.f32 %v361, %v383
    %v385 = vsub.f32 1.0, %v384
    %v386 = vmul.f32 %v383, %v385
    %v387 = vadd.f32 %v383, %v386
    %vm388 = vweird.f32 %v361
    %vm389 = vweird.f32 %v383
    %vm390 = vmor %vm388, %vm389
    %v391 = vsel %vm390, %v383, %v387
    %v392 = vand.u32 2147483647, %v361
    %vm393 = vcmp.eq.f32.partialorder %v392, 8.507059e+37
    %v394 = vand.u32 %v361, 2147483648
    %v395 = vor.u32 1.1754944e-38, %v394
    %v396 = vsel %vm393, %v395, %v391
    %v397 = vmul.f32 %v344, %v396
    %v398 = vrcp.pop %v364
    %v399 = vmul.f32 %v364, %v398
    %v400 = vsub.f32 1.0, %v399
    %v401 = vmul.f32 %v398, %v400
    %v402 = vadd.f32 %v398, %v401
    %vm403 = vweird.f32 %v364
    %vm404 = vweird.f32 %v398
    %vm405 = vmor %vm403, %vm404
    %v406 = vsel %vm405, %v398, %v402
    %v407 = vand.u32 2147483647, %v364
    %vm408 = vcmp.eq.f32.partialorder %v407, 8.507059e+37
    %v409 = vand.u32 %v364, 2147483648
    %v410 = vor.u32 1.1754944e-38, %v409
    %v411 = vsel %vm408, %v410, %v406
    %v412 = vmul.f32 %v346, %v411
    %v413 = vrcp.pop %v367
    %v414 = vmul.f32 %v367, %v413
    %v415 = vsub.f32 1.0, %v414
    %v416 = vmul.f32 %v413, %v415
    %v417 = vadd.f32 %v413, %v416
    %vm418 = vweird.f32 %v367
    %vm419 = vweird.f32 %v413
    %vm420 = vmor %vm418, %vm419
    %v421 = vsel %vm420, %v413, %v417
    %v422 = vand.u32 2147483647, %v367
    %vm423 = vcmp.eq.f32.partialorder %v422, 8.507059e+37
    %v424 = vand.u32 %v367, 2147483648
    %v425 = vor.u32 1.1754944e-38, %v424
    %v426 = vsel %vm423, %v425, %v421
    %v427 = vmul.f32 %v348, %v426
    %v428 = vrcp.pop %v370
    %v429 = vmul.f32 %v370, %v428
    %v430 = vsub.f32 1.0, %v429
    %v431 = vmul.f32 %v428, %v430
    %v432 = vadd.f32 %v428, %v431
    %vm433 = vweird.f32 %v370
    %vm434 = vweird.f32 %v428
    %vm435 = vmor %vm433, %vm434
    %v436 = vsel %vm435, %v428, %v432
    %v437 = vand.u32 2147483647, %v370
    %vm438 = vcmp.eq.f32.partialorder %v437, 8.507059e+37
    %v439 = vand.u32 %v370, 2147483648
    %v440 = vor.u32 1.1754944e-38, %v439
    %v441 = vsel %vm438, %v440, %v436
    %v442 = vmul.f32 %v350, %v441
    %v443 = vrcp.pop %v373
    %v444 = vmul.f32 %v373, %v443
    %v445 = vsub.f32 1.0, %v444
    %v446 = vmul.f32 %v443, %v445
    %v447 = vadd.f32 %v443, %v446
    %vm448 = vweird.f32 %v373
    %vm449 = vweird.f32 %v443
    %vm450 = vmor %vm448, %vm449
    %v451 = vsel %vm450, %v443, %v447
    %v452 = vand.u32 2147483647, %v373
    %vm453 = vcmp.eq.f32.partialorder %v452, 8.507059e+37
    %v454 = vand.u32 %v373, 2147483648
    %v455 = vor.u32 1.1754944e-38, %v454
    %v456 = vsel %vm453, %v455, %v451
    %v457 = vmul.f32 %v352, %v456
    %v458 = vrcp.pop %v376
    %v459 = vmul.f32 %v376, %v458
    %v460 = vsub.f32 1.0, %v459
    %v461 = vmul.f32 %v458, %v460
    %v462 = vadd.f32 %v458, %v461
    %vm463 = vweird.f32 %v376
    %vm464 = vweird.f32 %v458
    %vm465 = vmor %vm463, %vm464
    %v466 = vsel %vm465, %v458, %v462
    %v467 = vand.u32 2147483647, %v376
    %vm468 = vcmp.eq.f32.partialorder %v467, 8.507059e+37
    %v469 = vand.u32 %v376, 2147483648
    %v470 = vor.u32 1.1754944e-38, %v469
    %v471 = vsel %vm468, %v470, %v466
    %v472 = vmul.f32 %v354, %v471
    %v473 = vrcp.pop %v379
    %v474 = vmul.f32 %v379, %v473
    %v475 = vsub.f32 1.0, %v474
    %v476 = vmul.f32 %v473, %v475
    %v477 = vadd.f32 %v473, %v476
    %vm478 = vweird.f32 %v379
    %vm479 = vweird.f32 %v473
    %vm480 = vmor %vm478, %vm479
    %v481 = vsel %vm480, %v473, %v477
    %v482 = vand.u32 2147483647, %v379
    %vm483 = vcmp.eq.f32.partialorder %v482, 8.507059e+37
    %v484 = vand.u32 %v379, 2147483648
    %v485 = vor.u32 1.1754944e-38, %v484
    %v486 = vsel %vm483, %v485, %v481
    %v487 = vmul.f32 %v356, %v486
    %v488 = vrcp.pop %v382
    %v489 = vmul.f32 %v382, %v488
    %v490 = vsub.f32 1.0, %v489
    %v491 = vmul.f32 %v488, %v490
    %v492 = vadd.f32 %v488, %v491
    %vm493 = vweird.f32 %v382
    %vm494 = vweird.f32 %v488
    %vm495 = vmor %vm493, %vm494
    %v496 = vsel %vm495, %v488, %v492
    %v497 = vand.u32 2147483647, %v382
    %vm498 = vcmp.eq.f32.partialorder %v497, 8.507059e+37
    %v499 = vand.u32 %v382, 2147483648
    %v500 = vor.u32 1.1754944e-38, %v499
    %v501 = vsel %vm498, %v500, %v496
    %v502 = vmul.f32 %v358, %v501
    %v503 = vld [vmem:[#allocation5] sm:$0xff]
    %v504 = vld [vmem:[#allocation5 + $0x8] sm:$0xff]
    %v505 = vld [vmem:[#allocation5 + $0x10] sm:$0xff]
    %v506 = vld [vmem:[#allocation5 + $0x18] sm:$0xff]
    %v507 = vld [vmem:[#allocation5 + $0x20] sm:$0xff]
    %v508 = vld [vmem:[#allocation5 + $0x28] sm:$0xff]
    %v509 = vld [vmem:[#allocation5 + $0x30] sm:$0xff]
    %v510 = vld [vmem:[#allocation5 + $0x38] sm:$0xff]
    %v512 = vsel %vm310, %v397, 0
    %514 = vmatpush.msra.mxu0 0.0
    %515 = vmatpush.msra.mxu0 0.0
    %516 = vmatpush.msra.mxu0 0.0
    %517 = vmatpush.msra.mxu0 0.0
    %518 = vmatpush.msra.mxu0 0.0
    %519 = vmatpush.msra.mxu0 0.0
    %520 = vmatpush.msra.mxu0 0.0
    %521 = vmatpush.msra.mxu0 0.0
    %522 = vmatpush.msra.mxu0 0.0
    %523 = vmatpush.msra.mxu0 0.0
    %524 = vmatpush.msra.mxu0 0.0
    %525 = vmatpush.msra.mxu0 0.0
    %526 = vmatpush.msra.mxu0 0.0
    %527 = vmatpush.msra.mxu0 0.0
    %528 = vmatpush.msra.mxu0 0.0
    %529 = vmatpush.msra.mxu0 %v503
    %530 = vmatmul.f32.gmra.mxu0 %v512
    %v531 = vpop.f32.mrf.mxu0
    %v532 = vadd.f32 0.0, %v531
    %533 = vdwg.mxu0
    %v535 = vsel %vm310, %v412, 0
    %537 = vmatpush.msra.mxu0 0.0
    %538 = vmatpush.msra.mxu0 0.0
    %539 = vmatpush.msra.mxu0 0.0
    %540 = vmatpush.msra.mxu0 0.0
    %541 = vmatpush.msra.mxu0 0.0
    %542 = vmatpush.msra.mxu0 0.0
    %543 = vmatpush.msra.mxu0 0.0
    %544 = vmatpush.msra.mxu0 0.0
    %545 = vmatpush.msra.mxu0 0.0
    %546 = vmatpush.msra.mxu0 0.0
    %547 = vmatpush.msra.mxu0 0.0
    %548 = vmatpush.msra.mxu0 0.0
    %549 = vmatpush.msra.mxu0 0.0
    %550 = vmatpush.msra.mxu0 0.0
    %551 = vmatpush.msra.mxu0 0.0
    %552 = vmatpush.msra.mxu0 %v504
    %553 = vmatmul.f32.gmra.mxu0 %v535
    %v554 = vpop.f32.mrf.mxu0
    %v555 = vadd.f32 0.0, %v554
    %556 = vdwg.mxu0
    %v558 = vsel %vm310, %v427, 0
    %560 = vmatpush.msra.mxu0 0.0
    %561 = vmatpush.msra.mxu0 0.0
    %562 = vmatpush.msra.mxu0 0.0
    %563 = vmatpush.msra.mxu0 0.0
    %564 = vmatpush.msra.mxu0 0.0
    %565 = vmatpush.msra.mxu0 0.0
    %566 = vmatpush.msra.mxu0 0.0
    %567 = vmatpush.msra.mxu0 0.0
    %568 = vmatpush.msra.mxu0 0.0
    %569 = vmatpush.msra.mxu0 0.0
    %570 = vmatpush.msra.mxu0 0.0
    %571 = vmatpush.msra.mxu0 0.0
    %572 = vmatpush.msra.mxu0 0.0
    %573 = vmatpush.msra.mxu0 0.0
    %574 = vmatpush.msra.mxu0 0.0
    %575 = vmatpush.msra.mxu0 %v505
    %576 = vmatmul.f32.gmra.mxu0 %v558
    %v577 = vpop.f32.mrf.mxu0
    %v578 = vadd.f32 0.0, %v577
    %579 = vdwg.mxu0
    %v581 = vsel %vm310, %v442, 0
    %583 = vmatpush.msra.mxu0 0.0
    %584 = vmatpush.msra.mxu0 0.0
    %585 = vmatpush.msra.mxu0 0.0
    %586 = vmatpush.msra.mxu0 0.0
    %587 = vmatpush.msra.mxu0 0.0
    %588 = vmatpush.msra.mxu0 0.0
    %589 = vmatpush.msra.mxu0 0.0
    %590 = vmatpush.msra.mxu0 0.0
    %591 = vmatpush.msra.mxu0 0.0
    %592 = vmatpush.msra.mxu0 0.0
    %593 = vmatpush.msra.mxu0 0.0
    %594 = vmatpush.msra.mxu0 0.0
    %595 = vmatpush.msra.mxu0 0.0
    %596 = vmatpush.msra.mxu0 0.0
    %597 = vmatpush.msra.mxu0 0.0
    %598 = vmatpush.msra.mxu0 %v506
    %599 = vmatmul.f32.gmra.mxu0 %v581
    %v600 = vpop.f32.mrf.mxu0
    %v601 = vadd.f32 0.0, %v600
    %602 = vdwg.mxu0
    %v604 = vsel %vm310, %v457, 0
    %606 = vmatpush.msra.mxu0 0.0
    %607 = vmatpush.msra.mxu0 0.0
    %608 = vmatpush.msra.mxu0 0.0
    %609 = vmatpush.msra.mxu0 0.0
    %610 = vmatpush.msra.mxu0 0.0
    %611 = vmatpush.msra.mxu0 0.0
    %612 = vmatpush.msra.mxu0 0.0
    %613 = vmatpush.msra.mxu0 0.0
    %614 = vmatpush.msra.mxu0 0.0
    %615 = vmatpush.msra.mxu0 0.0
    %616 = vmatpush.msra.mxu0 0.0
    %617 = vmatpush.msra.mxu0 0.0
    %618 = vmatpush.msra.mxu0 0.0
    %619 = vmatpush.msra.mxu0 0.0
    %620 = vmatpush.msra.mxu0 0.0
    %621 = vmatpush.msra.mxu0 %v507
    %622 = vmatmul.f32.gmra.mxu0 %v604
    %v623 = vpop.f32.mrf.mxu0
    %v624 = vadd.f32 0.0, %v623
    %625 = vdwg.mxu0
    %v627 = vsel %vm310, %v472, 0
    %629 = vmatpush.msra.mxu0 0.0
    %630 = vmatpush.msra.mxu0 0.0
    %631 = vmatpush.msra.mxu0 0.0
    %632 = vmatpush.msra.mxu0 0.0
    %633 = vmatpush.msra.mxu0 0.0
    %634 = vmatpush.msra.mxu0 0.0
    %635 = vmatpush.msra.mxu0 0.0
    %636 = vmatpush.msra.mxu0 0.0
    %637 = vmatpush.msra.mxu0 0.0
    %638 = vmatpush.msra.mxu0 0.0
    %639 = vmatpush.msra.mxu0 0.0
    %640 = vmatpush.msra.mxu0 0.0
    %641 = vmatpush.msra.mxu0 0.0
    %642 = vmatpush.msra.mxu0 0.0
    %643 = vmatpush.msra.mxu0 0.0
    %644 = vmatpush.msra.mxu0 %v508
    %645 = vmatmul.f32.gmra.mxu0 %v627
    %v646 = vpop.f32.mrf.mxu0
    %v647 = vadd.f32 0.0, %v646
    %648 = vdwg.mxu0
    %v650 = vsel %vm310, %v487, 0
    %652 = vmatpush.msra.mxu0 0.0
    %653 = vmatpush.msra.mxu0 0.0
    %654 = vmatpush.msra.mxu0 0.0
    %655 = vmatpush.msra.mxu0 0.0
    %656 = vmatpush.msra.mxu0 0.0
    %657 = vmatpush.msra.mxu0 0.0
    %658 = vmatpush.msra.mxu0 0.0
    %659 = vmatpush.msra.mxu0 0.0
    %660 = vmatpush.msra.mxu0 0.0
    %661 = vmatpush.msra.mxu0 0.0
    %662 = vmatpush.msra.mxu0 0.0
    %663 = vmatpush.msra.mxu0 0.0
    %664 = vmatpush.msra.mxu0 0.0
    %665 = vmatpush.msra.mxu0 0.0
    %666 = vmatpush.msra.mxu0 0.0
    %667 = vmatpush.msra.mxu0 %v509
    %668 = vmatmul.f32.gmra.mxu0 %v650
    %v669 = vpop.f32.mrf.mxu0
    %v670 = vadd.f32 0.0, %v669
    %671 = vdwg.mxu0
    %v673 = vsel %vm310, %v502, 0
    %675 = vmatpush.msra.mxu0 0.0
    %676 = vmatpush.msra.mxu0 0.0
    %677 = vmatpush.msra.mxu0 0.0
    %678 = vmatpush.msra.mxu0 0.0
    %679 = vmatpush.msra.mxu0 0.0
    %680 = vmatpush.msra.mxu0 0.0
    %681 = vmatpush.msra.mxu0 0.0
    %682 = vmatpush.msra.mxu0 0.0
    %683 = vmatpush.msra.mxu0 0.0
    %684 = vmatpush.msra.mxu0 0.0
    %685 = vmatpush.msra.mxu0 0.0
    %686 = vmatpush.msra.mxu0 0.0
    %687 = vmatpush.msra.mxu0 0.0
    %688 = vmatpush.msra.mxu0 0.0
    %689 = vmatpush.msra.mxu0 0.0
    %690 = vmatpush.msra.mxu0 %v510
    %691 = vmatmul.f32.gmra.mxu0 %v673
    %v692 = vpop.f32.mrf.mxu0
    %v693 = vadd.f32 0.0, %v692
    %694 = vdwg.mxu0
    %695 = vst.msk [vmem:[#allocation7] sm:$0xff] %vm69, %v532
    %696 = vst.msk [vmem:[#allocation7 + $0x8] sm:$0xff] %vm69, %v555
    %697 = vst.msk [vmem:[#allocation7 + $0x10] sm:$0xff] %vm69, %v578
    %698 = vst.msk [vmem:[#allocation7 + $0x18] sm:$0xff] %vm69, %v601
    %699 = vst.msk [vmem:[#allocation7 + $0x20] sm:$0xff] %vm69, %v624
    %700 = vst.msk [vmem:[#allocation7 + $0x28] sm:$0xff] %vm69, %v647
    %701 = vst.msk [vmem:[#allocation7 + $0x30] sm:$0xff] %vm69, %v670
    %702 = vst.msk [vmem:[#allocation7 + $0x38] sm:$0xff] %vm69, %v693
    %703 = vst.msk [vmem:[#allocation8] sm:$0xff] %vm310, %v397
    %704 = vst.msk [vmem:[#allocation8 + $0x8] sm:$0xff] %vm310, %v412
    %705 = vst.msk [vmem:[#allocation8 + $0x10] sm:$0xff] %vm310, %v427
    %706 = vst.msk [vmem:[#allocation8 + $0x18] sm:$0xff] %vm310, %v442
    %707 = vst.msk [vmem:[#allocation8 + $0x20] sm:$0xff] %vm310, %v457
    %708 = vst.msk [vmem:[#allocation8 + $0x28] sm:$0xff] %vm310, %v472
    %709 = vst.msk [vmem:[#allocation8 + $0x30] sm:$0xff] %vm310, %v487
    %710 = vst.msk [vmem:[#allocation8 + $0x38] sm:$0xff] %vm310, %v502
    // Predicated region
    $region26: #{tpu_custom_call.1} parent=1 // pred_check
      _
    $region27: #{tpu_custom_call.1} parent=1 // pred_check_branch
      %712 = sbr.rel (0) target = $region29
    $region28: #{tpu_custom_call.1} parent=1 // pred_region
      %714 = vsyncadd [#allocation4], 0
      %s715 = sshll.u32 [#allocation7], 4
      %s716 = int_to_ptr.vmem [resolvable:$true] %s715
      %s717 = sshll.u32 %s4, 4
      %s718 = int_to_ptr.hbm [resolvable:$true] %s717
      %723 = dma.vmem_to_hbm [thread:$0]  %s716, 1024, %s718, [#allocation4], 128, 128, 8
    $region29: #{tpu_custom_call.1} parent=1 // pred_fallthru
      _
    // Predicated region
    $region30: #{tpu_custom_call.1} parent=1 // pred_check
      _
    $region31: #{tpu_custom_call.1} parent=1 // pred_check_branch
      %725 = sbr.rel (0) target = $region33
    $region32: #{tpu_custom_call.1} parent=1 // pred_region
      %727 = vsyncadd [#allocation9], 0
      %s728 = sshll.u32 [#allocation8], 4
      %s729 = int_to_ptr.vmem [resolvable:$true] %s728
      %s730 = sshll.u32 %s5, 4
      %s731 = int_to_ptr.hbm [resolvable:$true] %s730
      %736 = dma.vmem_to_hbm [thread:$0]  %s729, 1024, %s731, [#allocation9], 128, 128, 8
    $region33: #{tpu_custom_call.1} parent=1 // pred_fallthru
      _
    // Predicated region
    $region34: #{tpu_custom_call.1} parent=1 // pred_check
      _
    $region35: #{tpu_custom_call.1} parent=1 // pred_check_branch
      %738 = sbr.rel (0) target = $region37
    $region36: #{tpu_custom_call.1} parent=1 // pred_region
      %740 = dma.done [#allocation4], 1024
    $region37: #{tpu_custom_call.1} parent=1 // pred_fallthru
      _
    // Predicated region
    $region38: #{tpu_custom_call.1} parent=1 // pred_check
      _
    $region39: #{tpu_custom_call.1} parent=1 // pred_check_branch
      %742 = sbr.rel (0) target = $region41
    $region40: #{tpu_custom_call.1} parent=1 // pred_region
      %744 = dma.done [#allocation9], 1024
    $region41: #{tpu_custom_call.1} parent=1 // pred_fallthru
      _
    %745 = vsyncpa [#allocation3], 1
    %746 = vsyncpa [#allocation6], 1
    %747 = vsyncpa [#allocation4], 1
    %748 = vsyncpa [#allocation9], 1

</llo_original>
